<compile_context>
chip_gen: v7x
topology: tpu7x:2x2x1
jax: 0.10.0
libtpu: 0.0.40
codegen_flags: <defaults>
</compile_context>

<pallas_src>
import math
import functools

import jax
import jax.numpy as jnp
from jax import lax
from jax.experimental import pallas as pl
from jax.experimental.pallas import tpu as pltpu


def _rev_cumsum(x):
    """Inclusive reverse (suffix) cumulative sum along the last axis.

    log2(S)-step Hillis–Steele doubling scan (static lane shift + add),
    replacing the previous O(S^3) cumsum-as-matmul on the MXU.
    """
    rows, s = x.shape
    y = x
    shift = 1
    while shift < s:
        pad = jnp.zeros((rows, shift), dtype=x.dtype)
        y = y + jnp.concatenate([y[:, shift:], pad], axis=-1)
        shift *= 2
    return y


# ----------------------------------------------------------------------------
# Fused DTransformerLayer kernel (eval mode).  One (batch, head) pair per grid
# step; the head axis is the reduction axis (output / accumulator revisited).
# ----------------------------------------------------------------------------
def _akt_layer_kernel(neg_g_ref, bias_ref, maskf_ref, pos_ref,
                      xq_ref, xv_ref,
                      wq_ref, bq_ref, wv_ref, bv_ref, wo_ref, bo_ref,
                      lnw_ref, lnb_ref,
                      o_ref, acc_ref, *, d_k, n_heads):
    h = pl.program_id(1)

    @pl.when(h == 0)
    def _init():
        acc_ref[...] = jnp.zeros_like(acc_ref)

    xq = xq_ref[0]                                    # (S, D) f32 (residual path)
    xq_bf = xq.astype(jnp.bfloat16)
    xv_bf = xv_ref[0].astype(jnp.bfloat16)

    # Per-head Q / V projections.  Weights are head-major bf16 and sliced by
    # the BlockSpec (no in-kernel lane slicing).  kq_same=True and key is
    # query at every call site, so K == Q and the K projection is elided.
    q = jnp.dot(xq_bf, wq_ref[0], preferred_element_type=jnp.float32) + bq_ref[0]
    v = jnp.dot(xv_bf, wv_ref[0], preferred_element_type=jnp.float32) + bv_ref[0]
    q_bf = q.astype(jnp.bfloat16)

    # scores = q @ k^T / sqrt(d_k)  (contract last-with-last: no transpose).
    scores = lax.dot_general(
        q_bf, q_bf, (((1,), (1,)), ((), ())),
        preferred_element_type=jnp.float32) * jnp.float32(1.0 / math.sqrt(d_k))

    bias = bias_ref[...]                              # (S, S): 0 or -1e32 (additive)

    # First masked softmax (f32; feeds the distance statistics only).
    # TODO(synk): on v6e/v7x the exp/sqrt below could run in bf16 (EUP-bound
    # once the cumsum matmul is gone); kept f32 for v5e portability/accuracy.
    s1 = scores + bias
    e1 = jnp.exp(s1 - jnp.max(s1, axis=-1, keepdims=True))
    s_soft = e1 * pl.reciprocal(jnp.sum(e1, axis=-1, keepdims=True), approx=True)

    # disttotal - distcum  ==  reverse cumsum excluding self.
    rest = _rev_cumsum(s_soft) - s_soft
    dist = jnp.sqrt(jnp.maximum(rest * pos_ref[...], 0.0))
    gamma = neg_g_ref[h]                              # -softplus(gammas[h]) <= 0
    # torch's upper clip at 1e5 is dead code (gamma <= 0 => exp <= 1); only the
    # 1e-5 floor is kept.
    total_effect = jnp.maximum(jnp.exp(dist * gamma), 1e-5)

    # Second masked softmax on the decay-rescaled scores, then zero-fill.
    s2 = scores * total_effect + bias
    e2 = jnp.exp(s2 - jnp.max(s2, axis=-1, keepdims=True))
    p = e2 * pl.reciprocal(jnp.sum(e2, axis=-1, keepdims=True), approx=True)
    p = p * maskf_ref[...]

    pv = jnp.dot(p.astype(jnp.bfloat16), v.astype(jnp.bfloat16),
                 preferred_element_type=jnp.float32)              # (S, d_k)
    # Fold this head's slice of the out-projection and accumulate into the
    # (S, D) scratch — replaces concat(head_outs) @ wo entirely.
    acc_ref[...] += jnp.dot(pv.astype(jnp.bfloat16), wo_ref[0],
                            preferred_element_type=jnp.float32)   # (S, D)

    @pl.when(h == n_heads - 1)
    def _finalize():
        y = acc_ref[...] + bo_ref[...]
        x = xq + y                          # residual (dropout = identity, eval)
        mean = jnp.mean(x, axis=-1, keepdims=True)
        var = jnp.mean((x - mean) ** 2, axis=-1, keepdims=True)
        o_ref[0] = (x - mean) * lax.rsqrt(var + 1e-5) * lnw_ref[...] + lnb_ref[...]


def _attn_constants(s, peek_cur, n):
    """Grid-invariant (S,S) constants, built once per layer outside the kernel.

    TODO(synk): for long S on v7x (64 MiB VMEM) generate these in-kernel with
    broadcasted_iota and tile the query axis flash-style instead.
    """
    row = lax.broadcasted_iota(jnp.int32, (s, s), 0)
    col = lax.broadcasted_iota(jnp.int32, (s, s), 1)
    tri = (col <= row) if peek_cur else (col < row)
    keep = jnp.logical_and(tri, col != (row - (n - 1)))
    bias = jnp.where(keep, 0.0, -1e32).astype(jnp.float32)   # additive mask
    mask_f = keep.astype(jnp.float32)                        # multiplicative 0/1
    pos_eff = jnp.abs(col - row).astype(jnp.float32)         # |i - j|
    return bias, mask_f, pos_eff


def transformer_layer(query, values, p, *, n_heads, peek_cur, n):
    # TODO(synk): training-mode random per-sample mask zeroing (random.sample
    # over lens) and nn.Dropout are not represented; eval-mode semantics only.
    b, s, d = query.shape
    d_k = d // n_heads
    bias, mask_f, pos_eff = _attn_constants(s, peek_cur, n)

    kernel = functools.partial(_akt_layer_kernel, d_k=d_k, n_heads=n_heads)

    xspec = pl.BlockSpec((1, s, d), lambda bi, hi: (bi, 0, 0))     # per-batch tile
    cspec = pl.BlockSpec((s, s), lambda bi, hi: (0, 0))            # resident const
    whspec = pl.BlockSpec((1, d, d_k), lambda bi, hi: (hi, 0, 0))  # per-head W (bf16)
    bhspec = pl.BlockSpec((1, 1, d_k), lambda bi, hi: (hi, 0, 0))  # per-head bias
    wospec = pl.BlockSpec((1, d_k, d), lambda bi, hi: (hi, 0, 0))  # per-head out rows
    vspec = pl.BlockSpec((1, d), lambda bi, hi: (0, 0))            # resident (1, D)

    return pl.pallas_call(
        kernel,
        out_shape=jax.ShapeDtypeStruct((b, s, d), jnp.float32),
        grid=(b, n_heads),
        in_specs=[
            pl.BlockSpec(memory_space=pltpu.MemorySpace.SMEM),  # neg_gammas (H,)
            cspec, cspec, cspec,                                # bias, mask_f, pos_eff
            xspec, xspec,                                       # xq, xv
            whspec, bhspec, whspec, bhspec, wospec, vspec,      # wq,bq,wv,bv,wo,bo
            vspec, vspec,                                       # ln_w, ln_b
        ],
        out_specs=xspec,
        scratch_shapes=[pltpu.VMEM((s, d), jnp.float32)],       # per-batch accumulator
        compiler_params=pltpu.CompilerParams(
            dimension_semantics=("parallel", "arbitrary"),
            vmem_limit_bytes=64 * 1024 * 1024),
    )(p["neg_gammas"], bias, mask_f, pos_eff, query, values,
      p["wq_h"], p["bq_h"], p["wv_h"], p["bv_h"], p["wo_h"], p["bo"],
      p["ln_w"], p["ln_b"])


def akt_forward(params, q_emb, s_emb, lens, n=1):
    del lens  # only used by training-mode mask dropout
    nh = params["n_heads"]
    # key == query at every call site, so only (query, values) are passed.
    hq = transformer_layer(q_emb, q_emb, params["block1"],
                           n_heads=nh, peek_cur=True, n=n)
    hs = transformer_layer(s_emb, s_emb, params["block2"],
                           n_heads=nh, peek_cur=True, n=n)
    return transformer_layer(hq, hs, params["block3"],
                             n_heads=nh, peek_cur=False, n=n)


# ----------------------------------------------------------------------------
# Deterministic parameter init (shapes per MultiHeadAttention / LayerNorm).
# Weights are stored head-major and pre-cast to bf16 (review item): the kernel
# never re-casts or lane-slices them.
# ----------------------------------------------------------------------------
def init_layer_params(key, d_model, n_heads):
    d_k = d_model // n_heads
    ks = jax.random.split(key, 7)
    lim = 1.0 / math.sqrt(d_model)

    def lin(kw, kb):
        w = jax.random.uniform(kw, (d_model, d_model), jnp.float32, -lim, lim)
        bias = jax.random.uniform(kb, (1, d_model), jnp.float32, -lim, lim)
        return w, bias

    wq, bq = lin(ks[0], ks[1])
    wv, bv = lin(ks[2], ks[3])
    wo, bo = lin(ks[4], ks[5])
    gbound = math.sqrt(3.0)  # xavier_uniform on (n_heads, 1, 1): fan_in=fan_out=1
    gammas = jax.random.uniform(ks[6], (n_heads,), jnp.float32, -gbound, gbound)

    def in_heads(w):    # (D, D) -> (H, D, d_k): output columns grouped per head
        return jnp.transpose(
            w.reshape(d_model, n_heads, d_k), (1, 0, 2)).astype(jnp.bfloat16)

    def bias_heads(bv_):  # (1, D) -> (H, 1, d_k), kept f32 (added to f32 accum)
        return jnp.transpose(bv_.reshape(1, n_heads, d_k), (1, 0, 2))

    return dict(
        wq_h=in_heads(wq), bq_h=bias_heads(bq),
        wv_h=in_heads(wv), bv_h=bias_heads(bv),
        wo_h=wo.reshape(n_heads, d_k, d_model).astype(jnp.bfloat16),
        bo=bo,
        neg_gammas=-jax.nn.softplus(gammas),
        ln_w=jnp.ones((1, d_model), jnp.float32),
        ln_b=jnp.zeros((1, d_model), jnp.float32),
    )


if __name__ == "__main__":
    B, S, D, H = 2, 8, 32, 8  # batch, seq, d_model, n_heads  (d_k = 4)
    # NOTE: real AKT uses d_model=256 (lane-dense); toy D=32 keeps this script tiny.

    key = jax.random.PRNGKey(0)
    k1, k2, k3, k4, k5 = jax.random.split(key, 5)
    q_emb = jax.random.normal(k1, (B, S, D), jnp.float32)
    s_emb = jax.random.normal(k2, (B, S, D), jnp.float32)
    lens = jnp.full((B,), S, jnp.int32)

    params = {
        "n_heads": H,
        "block1": init_layer_params(k3, D, H),
        "block2": init_layer_params(k4, D, H),
        "block3": init_layer_params(k5, D, H),
    }

    out = akt_forward(params, q_emb, s_emb, lens, n=1)
    out = jax.block_until_ready(out)
    assert out.shape == (B, S, D)
    assert bool(jnp.all(jnp.isfinite(out)))
    print("KERNEL_OK")
</pallas_src>

<mosaic_0001>
module attributes {stable_mosaic.version = 11 : i64} {
  func.func @_akt_layer_kernel(%arg0: i32, %arg1: i32, %arg2: memref<8xf32, #tpu.memory_space<smem>>, %arg3: memref<8x8xf32, #tpu.memory_space<vmem>>, %arg4: memref<8x8xf32, #tpu.memory_space<vmem>>, %arg5: memref<8x8xf32, #tpu.memory_space<vmem>>, %arg6: memref<1x8x32xf32, #tpu.memory_space<vmem>>, %arg7: memref<1x8x32xf32, #tpu.memory_space<vmem>>, %arg8: memref<1x32x4xbf16, #tpu.memory_space<vmem>>, %arg9: memref<1x1x4xf32, #tpu.memory_space<vmem>>, %arg10: memref<1x32x4xbf16, #tpu.memory_space<vmem>>, %arg11: memref<1x1x4xf32, #tpu.memory_space<vmem>>, %arg12: memref<1x4x32xbf16, #tpu.memory_space<vmem>>, %arg13: memref<1x32xf32, #tpu.memory_space<vmem>>, %arg14: memref<1x32xf32, #tpu.memory_space<vmem>>, %arg15: memref<1x32xf32, #tpu.memory_space<vmem>>, %arg16: memref<1x8x32xf32, #tpu.memory_space<vmem>>, %arg17: memref<8x32xf32, #tpu.memory_space<vmem>>) attributes {dimension_semantics = [#tpu.dimension_semantics<parallel>, #tpu.dimension_semantics<arbitrary>], iteration_bounds = array<i64: 2, 8>, scalar_prefetch = 0 : i64, scratch_operands = 1 : i64, tpu.core_type = #tpu.core_type<tc>, window_params = [{transform_indices = @transform_0, window_bounds = array<i64: 8>}, {pipeline_mode = #tpu.pipeline_mode<synchronous>, transform_indices = @transform_1, window_bounds = array<i64: 8, 8>}, {pipeline_mode = #tpu.pipeline_mode<synchronous>, transform_indices = @transform_2, window_bounds = array<i64: 8, 8>}, {pipeline_mode = #tpu.pipeline_mode<synchronous>, transform_indices = @transform_3, window_bounds = array<i64: 8, 8>}, {transform_indices = @transform_4, window_bounds = array<i64: 1, 8, 32>}, {transform_indices = @transform_5, window_bounds = array<i64: 1, 8, 32>}, {transform_indices = @transform_6, window_bounds = array<i64: 1, 32, 4>}, {transform_indices = @transform_7, window_bounds = array<i64: 1, 1, 4>}, {transform_indices = @transform_8, window_bounds = array<i64: 1, 32, 4>}, {transform_indices = @transform_9, window_bounds = array<i64: 1, 1, 4>}, {transform_indices = @transform_10, window_bounds = array<i64: 1, 4, 32>}, {pipeline_mode = #tpu.pipeline_mode<synchronous>, transform_indices = @transform_11, window_bounds = array<i64: 1, 32>}, {pipeline_mode = #tpu.pipeline_mode<synchronous>, transform_indices = @transform_12, window_bounds = array<i64: 1, 32>}, {pipeline_mode = #tpu.pipeline_mode<synchronous>, transform_indices = @transform_13, window_bounds = array<i64: 1, 32>}, {transform_indices = @transform_14, window_bounds = array<i64: 1, 8, 32>}]} {
    %c0_i32 = arith.constant 0 : i32
    %0 = arith.cmpi eq, %arg1, %c0_i32 : i32
    %1 = arith.extui %0 : i1 to i32
    %c0_i32_0 = arith.constant 0 : i32
    %2 = arith.cmpi ne, %1, %c0_i32_0 : i32
    scf.if %2 {
      %cst_46 = arith.constant 0.000000e+00 : f32
      %91 = vector.broadcast %cst_46 : f32 to vector<8x32xf32>
      %c0_47 = arith.constant 0 : index
      %c0_48 = arith.constant 0 : index
      %92 = vector.load %arg17[%c0_47, %c0_48] : memref<8x32xf32, #tpu.memory_space<vmem>>, vector<8x32xf32>
      tpu.vector_store %arg17[%c0_47, %c0_48], %91 {strides = array<i32>} : memref<8x32xf32, #tpu.memory_space<vmem>>, vector<8x32xf32>,
    } else {
    }
    %c0 = arith.constant 0 : index
    %c0_1 = arith.constant 0 : index
    %c0_2 = arith.constant 0 : index
    %3 = vector.load %arg6[%c0, %c0_1, %c0_2] : memref<1x8x32xf32, #tpu.memory_space<vmem>>, vector<1x8x32xf32>
    %4 = vector.shape_cast %3 : vector<1x8x32xf32> to vector<8x32xf32>
    %5 = arith.truncf %4 : vector<8x32xf32> to vector<8x32xbf16>
    %c0_3 = arith.constant 0 : index
    %c0_4 = arith.constant 0 : index
    %c0_5 = arith.constant 0 : index
    %6 = vector.load %arg7[%c0_3, %c0_4, %c0_5] : memref<1x8x32xf32, #tpu.memory_space<vmem>>, vector<1x8x32xf32>
    %7 = vector.shape_cast %6 : vector<1x8x32xf32> to vector<8x32xf32>
    %8 = arith.truncf %7 : vector<8x32xf32> to vector<8x32xbf16>
    %c0_6 = arith.constant 0 : index
    %c0_7 = arith.constant 0 : index
    %c0_8 = arith.constant 0 : index
    %9 = vector.load %arg8[%c0_6, %c0_7, %c0_8] : memref<1x32x4xbf16, #tpu.memory_space<vmem>>, vector<1x32x4xbf16>
    %10 = vector.shape_cast %9 : vector<1x32x4xbf16> to vector<32x4xbf16>
    %cst = arith.constant dense<0.000000e+00> : vector<8x4xf32>
    %11 = tpu.matmul %5, %10, %cst {dimension_numbers = #tpu.dot_dimension_numbers<[1], [0], [0], [1], [0, 0, 1, 1], [], []>} : vector<8x32xbf16>, vector<32x4xbf16>, vector<8x4xf32> -> vector<8x4xf32>
    %c0_9 = arith.constant 0 : index
    %c0_10 = arith.constant 0 : index
    %c0_11 = arith.constant 0 : index
    %12 = vector.load %arg9[%c0_9, %c0_10, %c0_11] : memref<1x1x4xf32, #tpu.memory_space<vmem>>, vector<1x1x4xf32>
    %13 = vector.shape_cast %12 : vector<1x1x4xf32> to vector<1x4xf32>
    %14 = vector.broadcast %13 : vector<1x4xf32> to vector<8x4xf32>
    %15 = arith.addf %11, %14 : vector<8x4xf32>
    %c0_12 = arith.constant 0 : index
    %c0_13 = arith.constant 0 : index
    %c0_14 = arith.constant 0 : index
    %16 = vector.load %arg10[%c0_12, %c0_13, %c0_14] : memref<1x32x4xbf16, #tpu.memory_space<vmem>>, vector<1x32x4xbf16>
    %17 = vector.shape_cast %16 : vector<1x32x4xbf16> to vector<32x4xbf16>
    %cst_15 = arith.constant dense<0.000000e+00> : vector<8x4xf32>
    %18 = tpu.matmul %8, %17, %cst_15 {dimension_numbers = #tpu.dot_dimension_numbers<[1], [0], [0], [1], [0, 0, 1, 1], [], []>} : vector<8x32xbf16>, vector<32x4xbf16>, vector<8x4xf32> -> vector<8x4xf32>
    %c0_16 = arith.constant 0 : index
    %c0_17 = arith.constant 0 : index
    %c0_18 = arith.constant 0 : index
    %19 = vector.load %arg11[%c0_16, %c0_17, %c0_18] : memref<1x1x4xf32, #tpu.memory_space<vmem>>, vector<1x1x4xf32>
    %20 = vector.shape_cast %19 : vector<1x1x4xf32> to vector<1x4xf32>
    %21 = vector.broadcast %20 : vector<1x4xf32> to vector<8x4xf32>
    %22 = arith.addf %18, %21 : vector<8x4xf32>
    %23 = arith.truncf %15 : vector<8x4xf32> to vector<8x4xbf16>
    %cst_19 = arith.constant dense<0.000000e+00> : vector<8x8xf32>
    %24 = tpu.matmul %23, %23, %cst_19 {dimension_numbers = #tpu.dot_dimension_numbers<[1], [1], [0], [0], [0, 0, 1, 0], [], []>} : vector<8x4xbf16>, vector<8x4xbf16>, vector<8x8xf32> -> vector<8x8xf32>
    %cst_20 = arith.constant 5.000000e-01 : f32
    %25 = vector.broadcast %cst_20 : f32 to vector<8x8xf32>
    %26 = arith.mulf %24, %25 : vector<8x8xf32>
    %c0_21 = arith.constant 0 : index
    %c0_22 = arith.constant 0 : index
    %27 = vector.load %arg3[%c0_21, %c0_22] : memref<8x8xf32, #tpu.memory_space<vmem>>, vector<8x8xf32>
    %28 = arith.addf %26, %27 : vector<8x8xf32>
    %cst_23 = arith.constant dense<0xFF800000> : vector<8xf32>
    %29 = vector.multi_reduction <maximumf>, %28, %cst_23 [1] : vector<8x8xf32> to vector<8xf32>
    %30 = vector.shape_cast %29 : vector<8xf32> to vector<8x1xf32>
    %31 = vector.broadcast %30 : vector<8x1xf32> to vector<8x8xf32>
    %32 = arith.subf %28, %31 : vector<8x8xf32>
    %33 = math.exp %32 : vector<8x8xf32>
    %cst_24 = arith.constant dense<0.000000e+00> : vector<8xf32>
    %34 = vector.multi_reduction <add>, %33, %cst_24 [1] : vector<8x8xf32> to vector<8xf32>
    %35 = vector.shape_cast %34 : vector<8xf32> to vector<8x1xf32>
    %36 = tpu.reciprocal %35 {approx = true} : vector<8x1xf32> -> vector<8x1xf32>
    %37 = vector.broadcast %36 : vector<8x1xf32> to vector<8x8xf32>
    %38 = arith.mulf %33, %37 : vector<8x8xf32>
    %cst_25 = arith.constant 0.000000e+00 : f32
    %39 = vector.broadcast %cst_25 : f32 to vector<8x1xf32>
    %40 = vector.extract_strided_slice %38 {offsets = [0, 1], sizes = [8, 7], strides = [1, 1]} : vector<8x8xf32> to vector<8x7xf32>
    %41 = tpu.concatenate %40, %39 in 1 : vector<8x7xf32>, vector<8x1xf32> -> vector<8x8xf32>
    %42 = arith.addf %38, %41 : vector<8x8xf32>
    %cst_26 = arith.constant 0.000000e+00 : f32
    %43 = vector.broadcast %cst_26 : f32 to vector<8x2xf32>
    %44 = vector.extract_strided_slice %42 {offsets = [0, 2], sizes = [8, 6], strides = [1, 1]} : vector<8x8xf32> to vector<8x6xf32>
    %45 = tpu.concatenate %44, %43 in 1 : vector<8x6xf32>, vector<8x2xf32> -> vector<8x8xf32>
    %46 = arith.addf %42, %45 : vector<8x8xf32>
    %cst_27 = arith.constant 0.000000e+00 : f32
    %47 = vector.broadcast %cst_27 : f32 to vector<8x4xf32>
    %48 = vector.extract_strided_slice %46 {offsets = [0, 4], sizes = [8, 4], strides = [1, 1]} : vector<8x8xf32> to vector<8x4xf32>
    %49 = tpu.concatenate %48, %47 in 1 : vector<8x4xf32>, vector<8x4xf32> -> vector<8x8xf32>
    %50 = arith.addf %46, %49 : vector<8x8xf32>
    %51 = arith.subf %50, %38 : vector<8x8xf32>
    %c0_28 = arith.constant 0 : index
    %c0_29 = arith.constant 0 : index
    %52 = vector.load %arg5[%c0_28, %c0_29] : memref<8x8xf32, #tpu.memory_space<vmem>>, vector<8x8xf32>
    %53 = arith.mulf %51, %52 : vector<8x8xf32>
    %cst_30 = arith.constant 0.000000e+00 : f32
    %54 = vector.broadcast %cst_30 : f32 to vector<8x8xf32>
    %55 = arith.maximumf %53, %54 : vector<8x8xf32>
    %56 = math.sqrt %55 : vector<8x8xf32>
    %57 = arith.index_cast %arg1 : i32 to index
    %58 = memref.load %arg2[%57] : memref<8xf32, #tpu.memory_space<smem>>
    %59 = vector.broadcast %58 : f32 to vector<8x8xf32>
    %60 = arith.mulf %56, %59 : vector<8x8xf32>
    %61 = math.exp %60 : vector<8x8xf32>
    %cst_31 = arith.constant 9.99999974E-6 : f32
    %62 = vector.broadcast %cst_31 : f32 to vector<8x8xf32>
    %63 = arith.maximumf %61, %62 : vector<8x8xf32>
    %64 = arith.mulf %26, %63 : vector<8x8xf32>
    %65 = arith.addf %64, %27 : vector<8x8xf32>
    %cst_32 = arith.constant dense<0xFF800000> : vector<8xf32>
    %66 = vector.multi_reduction <maximumf>, %65, %cst_32 [1] : vector<8x8xf32> to vector<8xf32>
    %67 = vector.shape_cast %66 : vector<8xf32> to vector<8x1xf32>
    %68 = vector.broadcast %67 : vector<8x1xf32> to vector<8x8xf32>
    %69 = arith.subf %65, %68 : vector<8x8xf32>
    %70 = math.exp %69 : vector<8x8xf32>
    %cst_33 = arith.constant dense<0.000000e+00> : vector<8xf32>
    %71 = vector.multi_reduction <add>, %70, %cst_33 [1] : vector<8x8xf32> to vector<8xf32>
    %72 = vector.shape_cast %71 : vector<8xf32> to vector<8x1xf32>
    %73 = tpu.reciprocal %72 {approx = true} : vector<8x1xf32> -> vector<8x1xf32>
    %74 = vector.broadcast %73 : vector<8x1xf32> to vector<8x8xf32>
    %75 = arith.mulf %70, %74 : vector<8x8xf32>
    %c0_34 = arith.constant 0 : index
    %c0_35 = arith.constant 0 : index
    %76 = vector.load %arg4[%c0_34, %c0_35] : memref<8x8xf32, #tpu.memory_space<vmem>>, vector<8x8xf32>
    %77 = arith.mulf %75, %76 : vector<8x8xf32>
    %78 = arith.truncf %77 : vector<8x8xf32> to vector<8x8xbf16>
    %79 = arith.truncf %22 : vector<8x4xf32> to vector<8x4xbf16>
    %cst_36 = arith.constant dense<0.000000e+00> : vector<8x4xf32>
    %80 = tpu.matmul %78, %79, %cst_36 {dimension_numbers = #tpu.dot_dimension_numbers<[1], [0], [0], [1], [0, 0, 1, 1], [], []>} : vector<8x8xbf16>, vector<8x4xbf16>, vector<8x4xf32> -> vector<8x4xf32>
    %c0_37 = arith.constant 0 : index
    %c0_38 = arith.constant 0 : index
    %81 = vector.load %arg17[%c0_37, %c0_38] : memref<8x32xf32, #tpu.memory_space<vmem>>, vector<8x32xf32>
    %82 = arith.truncf %80 : vector<8x4xf32> to vector<8x4xbf16>
    %c0_39 = arith.constant 0 : index
    %c0_40 = arith.constant 0 : index
    %c0_41 = arith.constant 0 : index
    %83 = vector.load %arg12[%c0_39, %c0_40, %c0_41] : memref<1x4x32xbf16, #tpu.memory_space<vmem>>, vector<1x4x32xbf16>
    %84 = vector.shape_cast %83 : vector<1x4x32xbf16> to vector<4x32xbf16>
    %cst_42 = arith.constant dense<0.000000e+00> : vector<8x32xf32>
    %85 = tpu.matmul %82, %84, %cst_42 {dimension_numbers = #tpu.dot_dimension_numbers<[1], [0], [0], [1], [0, 0, 1, 1], [], []>} : vector<8x4xbf16>, vector<4x32xbf16>, vector<8x32xf32> -> vector<8x32xf32>
    %86 = arith.addf %81, %85 : vector<8x32xf32>
    %c0_43 = arith.constant 0 : index
    %c0_44 = arith.constant 0 : index
    %87 = vector.load %arg17[%c0_43, %c0_44] : memref<8x32xf32, #tpu.memory_space<vmem>>, vector<8x32xf32>
    tpu.vector_store %arg17[%c0_43, %c0_44], %86 {strides = array<i32>} : memref<8x32xf32, #tpu.memory_space<vmem>>, vector<8x32xf32>,
    %c7_i32 = arith.constant 7 : i32
    %88 = arith.cmpi eq, %arg1, %c7_i32 : i32
    %89 = arith.extui %88 : i1 to i32
    %c0_i32_45 = arith.constant 0 : i32
    %90 = arith.cmpi ne, %89, %c0_i32_45 : i32
    scf.if %90 {
      %c0_46 = arith.constant 0 : index
      %c0_47 = arith.constant 0 : index
      %91 = vector.load %arg17[%c0_46, %c0_47] : memref<8x32xf32, #tpu.memory_space<vmem>>, vector<8x32xf32>
      %c0_48 = arith.constant 0 : index
      %c0_49 = arith.constant 0 : index
      %92 = vector.load %arg13[%c0_48, %c0_49] : memref<1x32xf32, #tpu.memory_space<vmem>>, vector<1x32xf32>
      %93 = vector.broadcast %92 : vector<1x32xf32> to vector<8x32xf32>
      %94 = arith.addf %91, %93 : vector<8x32xf32>
      %95 = arith.addf %4, %94 : vector<8x32xf32>
      %cst_50 = arith.constant dense<0.000000e+00> : vector<8xf32>
      %96 = vector.multi_reduction <add>, %95, %cst_50 [1] : vector<8x32xf32> to vector<8xf32>
      %97 = vector.shape_cast %96 : vector<8xf32> to vector<8x1xf32>
      %cst_51 = arith.constant 3.200000e+01 : f32
      %98 = vector.broadcast %cst_51 : f32 to vector<8x1xf32>
      %99 = arith.divf %97, %98 : vector<8x1xf32>
      %100 = vector.broadcast %99 : vector<8x1xf32> to vector<8x32xf32>
      %101 = arith.subf %95, %100 : vector<8x32xf32>
      %102 = arith.mulf %101, %101 : vector<8x32xf32>
      %cst_52 = arith.constant dense<0.000000e+00> : vector<8xf32>
      %103 = vector.multi_reduction <add>, %102, %cst_52 [1] : vector<8x32xf32> to vector<8xf32>
      %104 = vector.shape_cast %103 : vector<8xf32> to vector<8x1xf32>
      %cst_53 = arith.constant 3.200000e+01 : f32
      %105 = vector.broadcast %cst_53 : f32 to vector<8x1xf32>
      %106 = arith.divf %104, %105 : vector<8x1xf32>
      %107 = vector.broadcast %99 : vector<8x1xf32> to vector<8x32xf32>
      %108 = arith.subf %95, %107 : vector<8x32xf32>
      %cst_54 = arith.constant 9.99999974E-6 : f32
      %109 = vector.broadcast %cst_54 : f32 to vector<8x1xf32>
      %110 = arith.addf %106, %109 : vector<8x1xf32>
      %111 = math.rsqrt %110 : vector<8x1xf32>
      %112 = vector.broadcast %111 : vector<8x1xf32> to vector<8x32xf32>
      %113 = arith.mulf %108, %112 : vector<8x32xf32>
      %c0_55 = arith.constant 0 : index
      %c0_56 = arith.constant 0 : index
      %114 = vector.load %arg14[%c0_55, %c0_56] : memref<1x32xf32, #tpu.memory_space<vmem>>, vector<1x32xf32>
      %115 = vector.broadcast %114 : vector<1x32xf32> to vector<8x32xf32>
      %116 = arith.mulf %113, %115 : vector<8x32xf32>
      %c0_57 = arith.constant 0 : index
      %c0_58 = arith.constant 0 : index
      %117 = vector.load %arg15[%c0_57, %c0_58] : memref<1x32xf32, #tpu.memory_space<vmem>>, vector<1x32xf32>
      %118 = vector.broadcast %117 : vector<1x32xf32> to vector<8x32xf32>
      %119 = arith.addf %116, %118 : vector<8x32xf32>
      %c0_59 = arith.constant 0 : index
      %c0_60 = arith.constant 0 : index
      %c0_61 = arith.constant 0 : index
      %120 = vector.load %arg16[%c0_59, %c0_60, %c0_61] : memref<1x8x32xf32, #tpu.memory_space<vmem>>, vector<1x8x32xf32>
      %121 = vector.shape_cast %120 : vector<1x8x32xf32> to vector<8x32xf32>
      %122 = vector.shape_cast %119 : vector<8x32xf32> to vector<1x8x32xf32>
      tpu.vector_store %arg16[%c0_59, %c0_60, %c0_61], %122 {strides = array<i32>} : memref<1x8x32xf32, #tpu.memory_space<vmem>>, vector<1x8x32xf32>,
    } else {
    }
    return
  }
  func.func @transform_0(%arg0: i32, %arg1: i32) -> i32 {
    %c0_i32 = arith.constant 0 : i32
    %c0_i32_0 = arith.constant 0 : i32
    return %c0_i32 : i32
  }
  func.func @transform_1(%arg0: i32, %arg1: i32) -> (i32, i32) {
    %c0_i32 = arith.constant 0 : i32
    %c0_i32_0 = arith.constant 0 : i32
    %c0_i32_1 = arith.constant 0 : i32
    return %c0_i32, %c0_i32_0 : i32, i32
  }
  func.func @transform_2(%arg0: i32, %arg1: i32) -> (i32, i32) {
    %c0_i32 = arith.constant 0 : i32
    %c0_i32_0 = arith.constant 0 : i32
    %c0_i32_1 = arith.constant 0 : i32
    return %c0_i32, %c0_i32_0 : i32, i32
  }
  func.func @transform_3(%arg0: i32, %arg1: i32) -> (i32, i32) {
    %c0_i32 = arith.constant 0 : i32
    %c0_i32_0 = arith.constant 0 : i32
    %c0_i32_1 = arith.constant 0 : i32
    return %c0_i32, %c0_i32_0 : i32, i32
  }
  func.func @transform_4(%arg0: i32, %arg1: i32) -> (i32, i32, i32) {
    %c0_i32 = arith.constant 0 : i32
    %c0_i32_0 = arith.constant 0 : i32
    %c0_i32_1 = arith.constant 0 : i32
    return %arg0, %c0_i32, %c0_i32_0 : i32, i32, i32
  }
  func.func @transform_5(%arg0: i32, %arg1: i32) -> (i32, i32, i32) {
    %c0_i32 = arith.constant 0 : i32
    %c0_i32_0 = arith.constant 0 : i32
    %c0_i32_1 = arith.constant 0 : i32
    return %arg0, %c0_i32, %c0_i32_0 : i32, i32, i32
  }
  func.func @transform_6(%arg0: i32, %arg1: i32) -> (i32, i32, i32) {
    %c0_i32 = arith.constant 0 : i32
    %c0_i32_0 = arith.constant 0 : i32
    %c0_i32_1 = arith.constant 0 : i32
    return %arg1, %c0_i32, %c0_i32_0 : i32, i32, i32
  }
  func.func @transform_7(%arg0: i32, %arg1: i32) -> (i32, i32, i32) {
    %c0_i32 = arith.constant 0 : i32
    %c0_i32_0 = arith.constant 0 : i32
    %c0_i32_1 = arith.constant 0 : i32
    return %arg1, %c0_i32, %c0_i32_0 : i32, i32, i32
  }
  func.func @transform_8(%arg0: i32, %arg1: i32) -> (i32, i32, i32) {
    %c0_i32 = arith.constant 0 : i32
    %c0_i32_0 = arith.constant 0 : i32
    %c0_i32_1 = arith.constant 0 : i32
    return %arg1, %c0_i32, %c0_i32_0 : i32, i32, i32
  }
  func.func @transform_9(%arg0: i32, %arg1: i32) -> (i32, i32, i32) {
    %c0_i32 = arith.constant 0 : i32
    %c0_i32_0 = arith.constant 0 : i32
    %c0_i32_1 = arith.constant 0 : i32
    return %arg1, %c0_i32, %c0_i32_0 : i32, i32, i32
  }
  func.func @transform_10(%arg0: i32, %arg1: i32) -> (i32, i32, i32) {
    %c0_i32 = arith.constant 0 : i32
    %c0_i32_0 = arith.constant 0 : i32
    %c0_i32_1 = arith.constant 0 : i32
    return %arg1, %c0_i32, %c0_i32_0 : i32, i32, i32
  }
  func.func @transform_11(%arg0: i32, %arg1: i32) -> (i32, i32) {
    %c0_i32 = arith.constant 0 : i32
    %c0_i32_0 = arith.constant 0 : i32
    %c0_i32_1 = arith.constant 0 : i32
    return %c0_i32, %c0_i32_0 : i32, i32
  }
  func.func @transform_12(%arg0: i32, %arg1: i32) -> (i32, i32) {
    %c0_i32 = arith.constant 0 : i32
    %c0_i32_0 = arith.constant 0 : i32
    %c0_i32_1 = arith.constant 0 : i32
    return %c0_i32, %c0_i32_0 : i32, i32
  }
  func.func @transform_13(%arg0: i32, %arg1: i32) -> (i32, i32) {
    %c0_i32 = arith.constant 0 : i32
    %c0_i32_0 = arith.constant 0 : i32
    %c0_i32_1 = arith.constant 0 : i32
    return %c0_i32, %c0_i32_0 : i32, i32
  }
  func.func @transform_14(%arg0: i32, %arg1: i32) -> (i32, i32, i32) {
    %c0_i32 = arith.constant 0 : i32
    %c0_i32_0 = arith.constant 0 : i32
    %c0_i32_1 = arith.constant 0 : i32
    return %arg0, %c0_i32, %c0_i32_0 : i32, i32, i32
  }
}

</mosaic_0001>

<llo_original>
// kernel: tpu_custom_call.1
$region0: #{tpu_custom_call.1}
  #allocation0 [shape = 'u32[]', space=smem, size = 0x4, offset = 0x4, fixed_abs, tag = 'smem constant byte address 0x4 - core index']
  #allocation1 [shape = 'u32[144,128]{1,0:T(1,128)}', space=vmem, size = 0x12000, scoped, tag = 'internal scratch']
  #allocation2 [shape = 'f32[8,32]{1,0:T(8,128)}', space=vmem, size = 0x1000, scoped, tag = 'scratch operand']
  %s0 = inlined_call_operand.hbm [shape: f32[8], index: 0, kind: input, shape index: {}]
  %s1 = inlined_call_operand.hbm [shape: f32[8,8], index: 1, kind: input, shape index: {}]
  %s2 = inlined_call_operand.hbm [shape: f32[8,8], index: 2, kind: input, shape index: {}]
  %s3 = inlined_call_operand.hbm [shape: f32[8,8], index: 3, kind: input, shape index: {}]
  %s4 = inlined_call_operand.hbm [shape: f32[2,8,32], index: 4, kind: input, shape index: {}]
  %s5 = inlined_call_operand.hbm [shape: f32[2,8,32], index: 5, kind: input, shape index: {}]
  %s6 = inlined_call_operand.hbm [shape: bf16[8,32,4], index: 6, kind: input, shape index: {}]
  %s7 = inlined_call_operand.hbm [shape: f32[8,1,4], index: 7, kind: input, shape index: {}]
  %s8 = inlined_call_operand.hbm [shape: bf16[8,32,4], index: 8, kind: input, shape index: {}]
  %s9 = inlined_call_operand.hbm [shape: f32[8,1,4], index: 9, kind: input, shape index: {}]
  %s10 = inlined_call_operand.hbm [shape: bf16[8,4,32], index: 10, kind: input, shape index: {}]
  %s11 = inlined_call_operand.hbm [shape: f32[1,32], index: 11, kind: input, shape index: {}]
  %s12 = inlined_call_operand.hbm [shape: f32[1,32], index: 12, kind: input, shape index: {}]
  %s13 = inlined_call_operand.hbm [shape: f32[1,32], index: 13, kind: input, shape index: {}]
  %s14 = inlined_call_operand.hbm [shape: f32[2,8,32], index: 14, kind: output, shape index: {}]
  %s15 = sld [smem:[#allocation0]]
  $region153: #{tpu_custom_call.1} parent=0
    _
  %s17 = ssub.s32 1, %s15
  %s18 = scalar_select 0, %s17, %s15
  $region1: #{tpu_custom_call.1} parent=0
    #allocation3 [shape = 'u8[512]{0}', space=smem, size = 0x200, scoped, tag = 'input window, operand 0, single buffered']
    #allocation4 [shape = 's32[2]{0}', space=sflag, size = 0x8, scoped, tag = 'scoped memory for tpu_custom_call.1']
    #allocation5 [shape = 's32[2]{0}', space=sflag, size = 0x8, scoped, tag = 'scoped memory for tpu_custom_call.1']
    #allocation6 [shape = 's32[2]{0}', space=sflag, size = 0x8, scoped, tag = 'scoped memory for tpu_custom_call.1']
    #allocation7 [shape = 'u8[4096]{0}', space=vmem, size = 0x1000, scoped, tag = 'input window, operand 1, single buffered']
    #allocation8 [shape = 'u8[4096]{0}', space=vmem, size = 0x1000, scoped, tag = 'input window, operand 2, single buffered']
    #allocation9 [shape = 's32[1]{0}', space=sflag, size = 0x4, scoped, tag = 'scoped memory for tpu_custom_call.1']
    #allocation10 [shape = 'u8[4096]{0}', space=vmem, size = 0x1000, scoped, tag = 'input window, operand 3, single buffered']
    #allocation11 [shape = 'u8[8192]{0}', space=vmem, size = 0x2000, scoped, tag = 'input window, operand 4']
    #allocation12 [shape = 's32[2]{0}', space=sflag, size = 0x8, scoped, tag = 'scoped memory for tpu_custom_call.1']
    #allocation13 [shape = 'u8[8192]{0}', space=vmem, size = 0x2000, scoped, tag = 'input window, operand 5']
    #allocation14 [shape = 'u8[16384]{0}', space=vmem, size = 0x4000, scoped, tag = 'input window, operand 6']
    #allocation15 [shape = 's32[2]{0}', space=sflag, size = 0x8, scoped, tag = 'scoped memory for tpu_custom_call.1']
    #allocation16 [shape = 'u8[1024]{0}', space=vmem, size = 0x400, scoped, tag = 'input window, operand 7']
    #allocation17 [shape = 'u8[16384]{0}', space=vmem, size = 0x4000, scoped, tag = 'input window, operand 8']
    #allocation18 [shape = 's32[2]{0}', space=sflag, size = 0x8, scoped, tag = 'scoped memory for tpu_custom_call.1']
    #allocation19 [shape = 'u8[1024]{0}', space=vmem, size = 0x400, scoped, tag = 'input window, operand 9']
    #allocation20 [shape = 'u8[2048]{0}', space=vmem, size = 0x800, scoped, tag = 'input window, operand 10']
    #allocation21 [shape = 's32[2]{0}', space=sflag, size = 0x8, scoped, tag = 'scoped memory for tpu_custom_call.1']
    #allocation22 [shape = 'u8[512]{0}', space=vmem, size = 0x400, scoped, tag = 'input window, operand 11, single buffered']
    #allocation23 [shape = 'u8[512]{0}', space=vmem, size = 0x400, scoped, tag = 'input window, operand 12, single buffered']
    #allocation24 [shape = 's32[1]{0}', space=sflag, size = 0x4, scoped, tag = 'scoped memory for tpu_custom_call.1']
    #allocation25 [shape = 'u8[512]{0}', space=vmem, size = 0x400, scoped, tag = 'input window, operand 13, single buffered']
    #allocation26 [shape = 'u8[8192]{0}', space=vmem, size = 0x2000, scoped, tag = 'output window, operand 0']
    %19 = vsyncpa [#allocation6], 0
    %20 = vsyncpa [#allocation4], 0
    %21 = vsyncpa [#allocation9], 0
    %22 = vsyncpa [#allocation12], 0
    %s23 = scalar_lea.sflag [#allocation12], 1
    %24 = vsyncpa %s23, 0
    %25 = vsyncpa [#allocation15], 0
    %s26 = scalar_lea.sflag [#allocation15], 1
    %27 = vsyncpa %s26, 0
    %28 = vsyncpa [#allocation18], 0
    %s29 = scalar_lea.sflag [#allocation18], 1
    %30 = vsyncpa %s29, 0
    %31 = vsyncpa [#allocation21], 0
    %s32 = scalar_lea.sflag [#allocation21], 1
    %33 = vsyncpa %s32, 0
    %34 = vsyncpa [#allocation24], 0
    %35 = vsyncpa [#allocation5], 0
    %s36 = scalar_lea.sflag [#allocation5], 1
    %37 = vsyncpa %s36, 0
    loop: start=0, step=1, limit=18
    $region2: #{tpu_custom_call.1} parent=1 // loop_pre_header
      _
    $region3: #{tpu_custom_call.1} parent=1 // loop_header
      %s39 = sphi 0, %s43
      %p40 = scmp.ge.s32.totalorder %s39, 18
      %s46 = sphi 0, %s58
      %s47 = sphi 0, %s54
      %s48 = sphi 0, %s46
      %s49 = sphi 0, %s47
      %s50 = sphi 0, %s48
      %s51 = sphi 0, %s49
      %s59 = sphi 0, %s59
      %s61 = sphi 0, %s59
      %s62 = sphi 0, %s61
      %s76 = sphi 0, %s62
      %s80 = sphi 0, %s80
      %s82 = sphi 0, %s80
      %s83 = sphi 0, %s82
      %s97 = sphi 0, %s83
      %s101 = sphi 0, %s101
      %s103 = sphi 0, %s101
      %s104 = sphi 0, %s103
      %s118 = sphi 0, %s104
      %s122 = sphi 0, %s122
      %s124 = sphi 0, %s122
      %s125 = sphi 0, %s124
      %s139 = sphi 0, %s125
      %s145 = sphi 0, %s147
      %s148 = sphi 0, %s145
      %s149 = sphi 0, %s148
      %s165 = sphi 0, %s149
      %s171 = sphi 0, %s173
      %s174 = sphi 0, %s171
      %s175 = sphi 0, %s174
      %s191 = sphi 0, %s175
      %s197 = sphi 0, %s199
      %s200 = sphi 0, %s197
      %s201 = sphi 0, %s200
      %s217 = sphi 0, %s201
      %s223 = sphi 0, %s225
      %s226 = sphi 0, %s223
      %s227 = sphi 0, %s226
      %s243 = sphi 0, %s227
      %s249 = sphi 0, %s251
      %s252 = sphi 0, %s249
      %s253 = sphi 0, %s252
      %s269 = sphi 0, %s253
      %s275 = sphi 0, %s277
      %s278 = sphi 0, %s275
      %s279 = sphi 0, %s278
      %s295 = sphi 0, %s279
      %s301 = sphi 0, %s303
      %s304 = sphi 0, %s301
      %s305 = sphi 0, %s304
      %s321 = sphi 0, %s305
      %s325 = sphi 0, %s325
      %s327 = sphi 0, %s325
      %s328 = sphi 0, %s327
      %s342 = sphi 0, %s328
      %s346 = sphi 0, %s346
      %s348 = sphi 0, %s346
      %s349 = sphi 0, %s348
      %s363 = sphi 0, %s349
      %s367 = sphi 0, %s367
      %s369 = sphi 0, %s367
      %s370 = sphi 0, %s369
      %s384 = sphi 0, %s370
      %s390 = sphi 0, %s392
      %s393 = sphi 0, %s390
      %s394 = sphi 0, %s393
      %s410 = sphi 0, %s394
    $region4: #{tpu_custom_call.1} parent=1 // loop_header_branch
      %42 = sbr.rel (%p40) target = $region8
    $region5: #{tpu_custom_call.1} parent=1 // loop_body
      %s44 = ssub.s32 %s39, 1
      %s45 = ssub.s32 %s39, 2
      %s52 = sadd.s32 1, %s47
      %p53 = scmp.ge.s32.totalorder %s52, 8
      %s54 = scalar_select %p53, 0, %s52
      %s55 = sadd.s32 1, %s46
      %s56 = scalar_select %p53, %s55, %s46
      %p57 = scmp.ge.s32.totalorder %s56, 2
      %s58 = scalar_select %p57, 0, %s56
      %s60 = sadd.s32 %s59, 1
      %p63 = scmp.eq.s32.totalorder %s39, 15
      %p64 = scmp.ne.s32.totalorder %s59, %s61
      %p65 = scmp.eq.s32.totalorder %s39, 0
      %p66 = por %p64, %p65
      %p67 = scmp.ne.s32.totalorder %s59, %s61
      %p68 = scmp.eq.s32.totalorder %s44, 15
      %p69 = por %p67, %p68
      %p70 = scmp.ne.s32.totalorder %s61, %s62
      %p71 = scmp.eq.s32.totalorder %s44, 0
      %p72 = por %p70, %p71
      %p73 = scmp.ne.s32.totalorder %s61, %s62
      %p74 = scmp.eq.s32.totalorder %s45, 15
      %p75 = por %p73, %p74
      %p77 = scmp.ne.s32.totalorder %s62, %s76
      %p78 = scmp.eq.s32.totalorder %s45, 0
      %p79 = por %p77, %p78
      %s81 = sadd.s32 %s80, 1
      %p84 = scmp.eq.s32.totalorder %s39, 15
      %p85 = scmp.ne.s32.totalorder %s80, %s82
      %p86 = scmp.eq.s32.totalorder %s39, 0
      %p87 = por %p85, %p86
      %p88 = scmp.ne.s32.totalorder %s80, %s82
      %p89 = scmp.eq.s32.totalorder %s44, 15
      %p90 = por %p88, %p89
      %p91 = scmp.ne.s32.totalorder %s82, %s83
      %p92 = scmp.eq.s32.totalorder %s44, 0
      %p93 = por %p91, %p92
      %p94 = scmp.ne.s32.totalorder %s82, %s83
      %p95 = scmp.eq.s32.totalorder %s45, 15
      %p96 = por %p94, %p95
      %p98 = scmp.ne.s32.totalorder %s83, %s97
      %p99 = scmp.eq.s32.totalorder %s45, 0
      %p100 = por %p98, %p99
      %s102 = sadd.s32 %s101, 1
      %p105 = scmp.eq.s32.totalorder %s39, 15
      %p106 = scmp.ne.s32.totalorder %s101, %s103
      %p107 = scmp.eq.s32.totalorder %s39, 0
      %p108 = por %p106, %p107
      %p109 = scmp.ne.s32.totalorder %s101, %s103
      %p110 = scmp.eq.s32.totalorder %s44, 15
      %p111 = por %p109, %p110
      %p112 = scmp.ne.s32.totalorder %s103, %s104
      %p113 = scmp.eq.s32.totalorder %s44, 0
      %p114 = por %p112, %p113
      %p115 = scmp.ne.s32.totalorder %s103, %s104
      %p116 = scmp.eq.s32.totalorder %s45, 15
      %p117 = por %p115, %p116
      %p119 = scmp.ne.s32.totalorder %s104, %s118
      %p120 = scmp.eq.s32.totalorder %s45, 0
      %p121 = por %p119, %p120
      %s123 = sadd.s32 %s122, 1
      %p126 = scmp.eq.s32.totalorder %s39, 15
      %p127 = scmp.ne.s32.totalorder %s122, %s124
      %p128 = scmp.eq.s32.totalorder %s39, 0
      %p129 = por %p127, %p128
      %p130 = scmp.ne.s32.totalorder %s122, %s124
      %p131 = scmp.eq.s32.totalorder %s44, 15
      %p132 = por %p130, %p131
      %p133 = scmp.ne.s32.totalorder %s124, %s125
      %p134 = scmp.eq.s32.totalorder %s44, 0
      %p135 = por %p133, %p134
      %p136 = scmp.ne.s32.totalorder %s124, %s125
      %p137 = scmp.eq.s32.totalorder %s45, 15
      %p138 = por %p136, %p137
      %p140 = scmp.ne.s32.totalorder %s125, %s139
      %p141 = scmp.eq.s32.totalorder %s45, 0
      %p142 = por %p140, %p141
      %s143 = ssub.s32 %s46, %s58
      %p144 = scmp.eq.s32.totalorder %s143, 0
      %s146 = sadd.s32 %s145, 1
      %s147 = scalar_select %p144, %s145, %s146
      %p150 = pneg %p144
      %p151 = scmp.eq.s32.totalorder %s39, 15
      %p152 = por %p150, %p151
      %p153 = scmp.ne.s32.totalorder %s145, %s148
      %p154 = scmp.eq.s32.totalorder %s39, 0
      %p155 = por %p153, %p154
      %p156 = scmp.ne.s32.totalorder %s145, %s148
      %p157 = scmp.eq.s32.totalorder %s44, 15
      %p158 = por %p156, %p157
      %p159 = scmp.ne.s32.totalorder %s148, %s149
      %p160 = scmp.eq.s32.totalorder %s44, 0
      %p161 = por %p159, %p160
      %p162 = scmp.ne.s32.totalorder %s148, %s149
      %p163 = scmp.eq.s32.totalorder %s45, 15
      %p164 = por %p162, %p163
      %p166 = scmp.ne.s32.totalorder %s149, %s165
      %p167 = scmp.eq.s32.totalorder %s45, 0
      %p168 = por %p166, %p167
      %s169 = ssub.s32 %s46, %s58
      %p170 = scmp.eq.s32.totalorder %s169, 0
      %s172 = sadd.s32 %s171, 1
      %s173 = scalar_select %p170, %s171, %s172
      %p176 = pneg %p170
      %p177 = scmp.eq.s32.totalorder %s39, 15
      %p178 = por %p176, %p177
      %p179 = scmp.ne.s32.totalorder %s171, %s174
      %p180 = scmp.eq.s32.totalorder %s39, 0
      %p181 = por %p179, %p180
      %p182 = scmp.ne.s32.totalorder %s171, %s174
      %p183 = scmp.eq.s32.totalorder %s44, 15
      %p184 = por %p182, %p183
      %p185 = scmp.ne.s32.totalorder %s174, %s175
      %p186 = scmp.eq.s32.totalorder %s44, 0
      %p187 = por %p185, %p186
      %p188 = scmp.ne.s32.totalorder %s174, %s175
      %p189 = scmp.eq.s32.totalorder %s45, 15
      %p190 = por %p188, %p189
      %p192 = scmp.ne.s32.totalorder %s175, %s191
      %p193 = scmp.eq.s32.totalorder %s45, 0
      %p194 = por %p192, %p193
      %s195 = ssub.s32 %s47, %s54
      %p196 = scmp.eq.s32.totalorder %s195, 0
      %s198 = sadd.s32 %s197, 1
      %s199 = scalar_select %p196, %s197, %s198
      %p202 = pneg %p196
      %p203 = scmp.eq.s32.totalorder %s39, 15
      %p204 = por %p202, %p203
      %p205 = scmp.ne.s32.totalorder %s197, %s200
      %p206 = scmp.eq.s32.totalorder %s39, 0
      %p207 = por %p205, %p206
      %p208 = scmp.ne.s32.totalorder %s197, %s200
      %p209 = scmp.eq.s32.totalorder %s44, 15
      %p210 = por %p208, %p209
      %p211 = scmp.ne.s32.totalorder %s200, %s201
      %p212 = scmp.eq.s32.totalorder %s44, 0
      %p213 = por %p211, %p212
      %p214 = scmp.ne.s32.totalorder %s200, %s201
      %p215 = scmp.eq.s32.totalorder %s45, 15
      %p216 = por %p214, %p215
      %p218 = scmp.ne.s32.totalorder %s201, %s217
      %p219 = scmp.eq.s32.totalorder %s45, 0
      %p220 = por %p218, %p219
      %s221 = ssub.s32 %s47, %s54
      %p222 = scmp.eq.s32.totalorder %s221, 0
      %s224 = sadd.s32 %s223, 1
      %s225 = scalar_select %p222, %s223, %s224
      %p228 = pneg %p222
      %p229 = scmp.eq.s32.totalorder %s39, 15
      %p230 = por %p228, %p229
      %p231 = scmp.ne.s32.totalorder %s223, %s226
      %p232 = scmp.eq.s32.totalorder %s39, 0
      %p233 = por %p231, %p232
      %p234 = scmp.ne.s32.totalorder %s223, %s226
      %p235 = scmp.eq.s32.totalorder %s44, 15
      %p236 = por %p234, %p235
      %p237 = scmp.ne.s32.totalorder %s226, %s227
      %p238 = scmp.eq.s32.totalorder %s44, 0
      %p239 = por %p237, %p238
      %p240 = scmp.ne.s32.totalorder %s226, %s227
      %p241 = scmp.eq.s32.totalorder %s45, 15
      %p242 = por %p240, %p241
      %p244 = scmp.ne.s32.totalorder %s227, %s243
      %p245 = scmp.eq.s32.totalorder %s45, 0
      %p246 = por %p244, %p245
      %s247 = ssub.s32 %s47, %s54
      %p248 = scmp.eq.s32.totalorder %s247, 0
      %s250 = sadd.s32 %s249, 1
      %s251 = scalar_select %p248, %s249, %s250
      %p254 = pneg %p248
      %p255 = scmp.eq.s32.totalorder %s39, 15
      %p256 = por %p254, %p255
      %p257 = scmp.ne.s32.totalorder %s249, %s252
      %p258 = scmp.eq.s32.totalorder %s39, 0
      %p259 = por %p257, %p258
      %p260 = scmp.ne.s32.totalorder %s249, %s252
      %p261 = scmp.eq.s32.totalorder %s44, 15
      %p262 = por %p260, %p261
      %p263 = scmp.ne.s32.totalorder %s252, %s253
      %p264 = scmp.eq.s32.totalorder %s44, 0
      %p265 = por %p263, %p264
      %p266 = scmp.ne.s32.totalorder %s252, %s253
      %p267 = scmp.eq.s32.totalorder %s45, 15
      %p268 = por %p266, %p267
      %p270 = scmp.ne.s32.totalorder %s253, %s269
      %p271 = scmp.eq.s32.totalorder %s45, 0
      %p272 = por %p270, %p271
      %s273 = ssub.s32 %s47, %s54
      %p274 = scmp.eq.s32.totalorder %s273, 0
      %s276 = sadd.s32 %s275, 1
      %s277 = scalar_select %p274, %s275, %s276
      %p280 = pneg %p274
      %p281 = scmp.eq.s32.totalorder %s39, 15
      %p282 = por %p280, %p281
      %p283 = scmp.ne.s32.totalorder %s275, %s278
      %p284 = scmp.eq.s32.totalorder %s39, 0
      %p285 = por %p283, %p284
      %p286 = scmp.ne.s32.totalorder %s275, %s278
      %p287 = scmp.eq.s32.totalorder %s44, 15
      %p288 = por %p286, %p287
      %p289 = scmp.ne.s32.totalorder %s278, %s279
      %p290 = scmp.eq.s32.totalorder %s44, 0
      %p291 = por %p289, %p290
      %p292 = scmp.ne.s32.totalorder %s278, %s279
      %p293 = scmp.eq.s32.totalorder %s45, 15
      %p294 = por %p292, %p293
      %p296 = scmp.ne.s32.totalorder %s279, %s295
      %p297 = scmp.eq.s32.totalorder %s45, 0
      %p298 = por %p296, %p297
      %s299 = ssub.s32 %s47, %s54
      %p300 = scmp.eq.s32.totalorder %s299, 0
      %s302 = sadd.s32 %s301, 1
      %s303 = scalar_select %p300, %s301, %s302
      %p306 = pneg %p300
      %p307 = scmp.eq.s32.totalorder %s39, 15
      %p308 = por %p306, %p307
      %p309 = scmp.ne.s32.totalorder %s301, %s304
      %p310 = scmp.eq.s32.totalorder %s39, 0
      %p311 = por %p309, %p310
      %p312 = scmp.ne.s32.totalorder %s301, %s304
      %p313 = scmp.eq.s32.totalorder %s44, 15
      %p314 = por %p312, %p313
      %p315 = scmp.ne.s32.totalorder %s304, %s305
      %p316 = scmp.eq.s32.totalorder %s44, 0
      %p317 = por %p315, %p316
      %p318 = scmp.ne.s32.totalorder %s304, %s305
      %p319 = scmp.eq.s32.totalorder %s45, 15
      %p320 = por %p318, %p319
      %p322 = scmp.ne.s32.totalorder %s305, %s321
      %p323 = scmp.eq.s32.totalorder %s45, 0
      %p324 = por %p322, %p323
      %s326 = sadd.s32 %s325, 1
      %p329 = scmp.eq.s32.totalorder %s39, 15
      %p330 = scmp.ne.s32.totalorder %s325, %s327
      %p331 = scmp.eq.s32.totalorder %s39, 0
      %p332 = por %p330, %p331
      %p333 = scmp.ne.s32.totalorder %s325, %s327
      %p334 = scmp.eq.s32.totalorder %s44, 15
      %p335 = por %p333, %p334
      %p336 = scmp.ne.s32.totalorder %s327, %s328
      %p337 = scmp.eq.s32.totalorder %s44, 0
      %p338 = por %p336, %p337
      %p339 = scmp.ne.s32.totalorder %s327, %s328
      %p340 = scmp.eq.s32.totalorder %s45, 15
      %p341 = por %p339, %p340
      %p343 = scmp.ne.s32.totalorder %s328, %s342
      %p344 = scmp.eq.s32.totalorder %s45, 0
      %p345 = por %p343, %p344
      %s347 = sadd.s32 %s346, 1
      %p350 = scmp.eq.s32.totalorder %s39, 15
      %p351 = scmp.ne.s32.totalorder %s346, %s348
      %p352 = scmp.eq.s32.totalorder %s39, 0
      %p353 = por %p351, %p352
      %p354 = scmp.ne.s32.totalorder %s346, %s348
      %p355 = scmp.eq.s32.totalorder %s44, 15
      %p356 = por %p354, %p355
      %p357 = scmp.ne.s32.totalorder %s348, %s349
      %p358 = scmp.eq.s32.totalorder %s44, 0
      %p359 = por %p357, %p358
      %p360 = scmp.ne.s32.totalorder %s348, %s349
      %p361 = scmp.eq.s32.totalorder %s45, 15
      %p362 = por %p360, %p361
      %p364 = scmp.ne.s32.totalorder %s349, %s363
      %p365 = scmp.eq.s32.totalorder %s45, 0
      %p366 = por %p364, %p365
      %s368 = sadd.s32 %s367, 1
      %p371 = scmp.eq.s32.totalorder %s39, 15
      %p372 = scmp.ne.s32.totalorder %s367, %s369
      %p373 = scmp.eq.s32.totalorder %s39, 0
      %p374 = por %p372, %p373
      %p375 = scmp.ne.s32.totalorder %s367, %s369
      %p376 = scmp.eq.s32.totalorder %s44, 15
      %p377 = por %p375, %p376
      %p378 = scmp.ne.s32.totalorder %s369, %s370
      %p379 = scmp.eq.s32.totalorder %s44, 0
      %p380 = por %p378, %p379
      %p381 = scmp.ne.s32.totalorder %s369, %s370
      %p382 = scmp.eq.s32.totalorder %s45, 15
      %p383 = por %p381, %p382
      %p385 = scmp.ne.s32.totalorder %s370, %s384
      %p386 = scmp.eq.s32.totalorder %s45, 0
      %p387 = por %p385, %p386
      %s388 = ssub.s32 %s46, %s58
      %p389 = scmp.eq.s32.totalorder %s388, 0
      %s391 = sadd.s32 %s390, 1
      %s392 = scalar_select %p389, %s390, %s391
      %p395 = pneg %p389
      %p396 = scmp.eq.s32.totalorder %s39, 15
      %p397 = por %p395, %p396
      %p398 = scmp.ne.s32.totalorder %s390, %s393
      %p399 = scmp.eq.s32.totalorder %s39, 0
      %p400 = por %p398, %p399
      %p401 = scmp.ne.s32.totalorder %s390, %s393
      %p402 = scmp.eq.s32.totalorder %s44, 15
      %p403 = por %p401, %p402
      %p404 = scmp.ne.s32.totalorder %s393, %s394
      %p405 = scmp.eq.s32.totalorder %s44, 0
      %p406 = por %p404, %p405
      %p407 = scmp.ne.s32.totalorder %s393, %s394
      %p408 = scmp.eq.s32.totalorder %s45, 15
      %p409 = por %p407, %p408
      %p411 = scmp.ne.s32.totalorder %s394, %s410
      %p412 = scmp.eq.s32.totalorder %s45, 0
      %p413 = por %p411, %p412
      %p414 = scmp.le.s32.totalorder 1, %s39
      %p415 = scmp.lt.s32.totalorder %s39, 17
      %p416 = pnand %p414, %p415
      %p417 = pneg %p416
      // Predicated region
      $region9: #{tpu_custom_call.1} parent=5 // pred_check
        _
      $region10: #{tpu_custom_call.1} parent=5 // pred_check_branch
        %419 = sbr.rel (%p416) target = $region12
      $region11: #{tpu_custom_call.1} parent=5 // pred_region
        %s420 = ssub.s32 %s39, 1
        // Predicated region
        $region13: #{tpu_custom_call.1} parent=11 // pred_check
          %p421 = pneg %p72
        $region14: #{tpu_custom_call.1} parent=11 // pred_check_branch
          %423 = sbr.rel (%p421) target = $region16
        $region15: #{tpu_custom_call.1} parent=11 // pred_region
          %s425 = ssub.s32 16, 16
          %426 = vsyncadd [#allocation6], %s425
          %429 = dma.hbm_to_smem %s0, 16, [#allocation3], [#allocation6]
        $region16: #{tpu_custom_call.1} parent=11 // pred_fallthru
          _
        // Predicated region
        $region17: #{tpu_custom_call.1} parent=11 // pred_check
          %p430 = pneg %p93
        $region18: #{tpu_custom_call.1} parent=11 // pred_check_branch
          %432 = sbr.rel (%p430) target = $region20
        $region19: #{tpu_custom_call.1} parent=11 // pred_region
          %s434 = ssub.s32 128, 128
          %435 = vsyncadd [#allocation4], %s434
          %s437 = sshll.u32 [#allocation7], 4
          %s438 = int_to_ptr.vmem [resolvable:$true] %s437
          %440 = dma.hbm_to_vmem [thread:$0]  %s1, 128, %s438, [#allocation4]
        $region20: #{tpu_custom_call.1} parent=11 // pred_fallthru
          _
        // Predicated region
        $region21: #{tpu_custom_call.1} parent=11 // pred_check
          %p441 = pneg %p114
        $region22: #{tpu_custom_call.1} parent=11 // pred_check_branch
          %443 = sbr.rel (%p441) target = $region24
        $region23: #{tpu_custom_call.1} parent=11 // pred_region
          %s445 = ssub.s32 128, 128
          %446 = vsyncadd [#allocation9], %s445
          %s448 = sshll.u32 [#allocation8], 4
          %s449 = int_to_ptr.vmem [resolvable:$true] %s448
          %451 = dma.hbm_to_vmem [thread:$0]  %s2, 128, %s449, [#allocation9]
        $region24: #{tpu_custom_call.1} parent=11 // pred_fallthru
          _
        // Predicated region
        $region25: #{tpu_custom_call.1} parent=11 // pred_check
          %p452 = pneg %p135
        $region26: #{tpu_custom_call.1} parent=11 // pred_check_branch
          %454 = sbr.rel (%p452) target = $region28
        $region27: #{tpu_custom_call.1} parent=11 // pred_region
          %s456 = ssub.s32 128, 128
          %457 = vsyncadd [#allocation9], %s456
          %s459 = sshll.u32 [#allocation10], 4
          %s460 = int_to_ptr.vmem [resolvable:$true] %s459
          %462 = dma.hbm_to_vmem [thread:$0]  %s3, 128, %s460, [#allocation9]
        $region28: #{tpu_custom_call.1} parent=11 // pred_fallthru
          _
        // Predicated region
        $region29: #{tpu_custom_call.1} parent=11 // pred_check
          %p463 = pneg %p338
        $region30: #{tpu_custom_call.1} parent=11 // pred_check_branch
          %465 = sbr.rel (%p463) target = $region32
        $region31: #{tpu_custom_call.1} parent=11 // pred_region
          %s467 = ssub.s32 16, 16
          %468 = vsyncadd [#allocation21], %s467
          %s470 = sshll.u32 [#allocation22], 4
          %s471 = int_to_ptr.vmem [resolvable:$true] %s470
          %473 = dma.hbm_to_vmem [thread:$0]  %s11, 16, %s471, [#allocation21]
        $region32: #{tpu_custom_call.1} parent=11 // pred_fallthru
          _
        // Predicated region
        $region33: #{tpu_custom_call.1} parent=11 // pred_check
          %p474 = pneg %p359
        $region34: #{tpu_custom_call.1} parent=11 // pred_check_branch
          %476 = sbr.rel (%p474) target = $region36
        $region35: #{tpu_custom_call.1} parent=11 // pred_region
          %s478 = ssub.s32 16, 16
          %479 = vsyncadd [#allocation24], %s478
          %s481 = sshll.u32 [#allocation23], 4
          %s482 = int_to_ptr.vmem [resolvable:$true] %s481
          %484 = dma.hbm_to_vmem [thread:$0]  %s12, 16, %s482, [#allocation24]
        $region36: #{tpu_custom_call.1} parent=11 // pred_fallthru
          _
        // Predicated region
        $region37: #{tpu_custom_call.1} parent=11 // pred_check
          %p485 = pneg %p380
        $region38: #{tpu_custom_call.1} parent=11 // pred_check_branch
          %487 = sbr.rel (%p485) target = $region40
        $region39: #{tpu_custom_call.1} parent=11 // pred_region
          %s489 = ssub.s32 16, 16
          %490 = vsyncadd [#allocation24], %s489
          %s492 = sshll.u32 [#allocation25], 4
          %s493 = int_to_ptr.vmem [resolvable:$true] %s492
          %495 = dma.hbm_to_vmem [thread:$0]  %s13, 16, %s493, [#allocation24]
        $region40: #{tpu_custom_call.1} parent=11 // pred_fallthru
          _
      $region12: #{tpu_custom_call.1} parent=5 // pred_fallthru
        _
      %p496 = scmp.lt.s32.totalorder %s39, 16
      // Predicated region
      $region41: #{tpu_custom_call.1} parent=5 // pred_check
        %p497 = pneg %p496
      $region42: #{tpu_custom_call.1} parent=5 // pred_check_branch
        %499 = sbr.rel (%p497) target = $region44
      $region43: #{tpu_custom_call.1} parent=5 // pred_region
        // Predicated region
        $region45: #{tpu_custom_call.1} parent=43 // pred_check
          %p500 = pneg %p155
        $region46: #{tpu_custom_call.1} parent=43 // pred_check_branch
          %502 = sbr.rel (%p500) target = $region48
        $region47: #{tpu_custom_call.1} parent=43 // pred_region
          %s503 = sand.u32 %s39, 1
          %s504 = scalar_lea.sflag [#allocation12], %s503
          %s505 = sand.u32 %s145, 1
          %s506 = smul.addr %s505, 8
          %s507 = scalar_lea.vmem [#allocation11], %s506
          %s509 = ssub.s32 128, 128
          %510 = vsyncadd %s504, %s509
          %s511 = smul.addr %s46, 128
          %s512 = scalar_lea.hbm %s4, %s511
          %s514 = sshll.u32 %s507, 4
          %s515 = int_to_ptr.vmem [resolvable:$true] %s514
          %517 = dma.hbm_to_vmem [thread:$0]  %s512, 128, %s515, %s504
        $region48: #{tpu_custom_call.1} parent=43 // pred_fallthru
          _
        // Predicated region
        $region49: #{tpu_custom_call.1} parent=43 // pred_check
          %p518 = pneg %p181
        $region50: #{tpu_custom_call.1} parent=43 // pred_check_branch
          %520 = sbr.rel (%p518) target = $region52
        $region51: #{tpu_custom_call.1} parent=43 // pred_region
          %s521 = sand.u32 %s39, 1
          %s522 = scalar_lea.sflag [#allocation12], %s521
          %s523 = sand.u32 %s171, 1
          %s524 = smul.addr %s523, 8
          %s525 = scalar_lea.vmem [#allocation13], %s524
          %s527 = ssub.s32 128, 128
          %528 = vsyncadd %s522, %s527
          %s529 = smul.addr %s46, 128
          %s530 = scalar_lea.hbm %s5, %s529
          %s532 = sshll.u32 %s525, 4
          %s533 = int_to_ptr.vmem [resolvable:$true] %s532
          %535 = dma.hbm_to_vmem [thread:$0]  %s530, 128, %s533, %s522
        $region52: #{tpu_custom_call.1} parent=43 // pred_fallthru
          _
        // Predicated region
        $region53: #{tpu_custom_call.1} parent=43 // pred_check
          %p536 = pneg %p207
        $region54: #{tpu_custom_call.1} parent=43 // pred_check_branch
          %538 = sbr.rel (%p536) target = $region56
        $region55: #{tpu_custom_call.1} parent=43 // pred_region
          %s539 = sand.u32 %s39, 1
          %s540 = scalar_lea.sflag [#allocation15], %s539
          %s541 = sand.u32 %s197, 1
          %s542 = smul.addr %s541, 16
          %s543 = scalar_lea.vmem [#allocation14], %s542
          %s545 = ssub.s32 256, 256
          %546 = vsyncadd %s540, %s545
          %s547 = smul.addr %s47, 4
          %s548 = smul.addr %s547, 64
          %s549 = scalar_lea.hbm %s6, %s548
          %s550 = sshll.u32 %s543, 4
          %s551 = int_to_ptr.vmem [resolvable:$true] %s550
          %556 = dma.hbm_to_vmem [thread:$0]  %s549, 256, %s551, %s540, 64, 64, 4
        $region56: #{tpu_custom_call.1} parent=43 // pred_fallthru
          _
        // Predicated region
        $region57: #{tpu_custom_call.1} parent=43 // pred_check
          %p557 = pneg %p233
        $region58: #{tpu_custom_call.1} parent=43 // pred_check_branch
          %559 = sbr.rel (%p557) target = $region60
        $region59: #{tpu_custom_call.1} parent=43 // pred_region
          %s560 = sand.u32 %s39, 1
          %s561 = scalar_lea.sflag [#allocation15], %s560
          %s562 = sand.u32 %s223, 1
          %s563 = scalar_lea.vmem [#allocation16], %s562
          %s565 = ssub.s32 16, 16
          %566 = vsyncadd %s561, %s565
          %s567 = smul.addr %s47, 16
          %s568 = scalar_lea.hbm %s7, %s567
          %s570 = sshll.u32 %s563, 4
          %s571 = int_to_ptr.vmem [resolvable:$true] %s570
          %573 = dma.hbm_to_vmem [thread:$0]  %s568, 16, %s571, %s561
        $region60: #{tpu_custom_call.1} parent=43 // pred_fallthru
          _
        // Predicated region
        $region61: #{tpu_custom_call.1} parent=43 // pred_check
          %p574 = pneg %p259
        $region62: #{tpu_custom_call.1} parent=43 // pred_check_branch
          %576 = sbr.rel (%p574) target = $region64
        $region63: #{tpu_custom_call.1} parent=43 // pred_region
          %s577 = sand.u32 %s39, 1
          %s578 = scalar_lea.sflag [#allocation18], %s577
          %s579 = sand.u32 %s249, 1
          %s580 = smul.addr %s579, 16
          %s581 = scalar_lea.vmem [#allocation17], %s580
          %s583 = ssub.s32 256, 256
          %584 = vsyncadd %s578, %s583
          %s585 = smul.addr %s47, 4
          %s586 = smul.addr %s585, 64
          %s587 = scalar_lea.hbm %s8, %s586
          %s588 = sshll.u32 %s581, 4
          %s589 = int_to_ptr.vmem [resolvable:$true] %s588
          %594 = dma.hbm_to_vmem [thread:$0]  %s587, 256, %s589, %s578, 64, 64, 4
        $region64: #{tpu_custom_call.1} parent=43 // pred_fallthru
          _
        // Predicated region
        $region65: #{tpu_custom_call.1} parent=43 // pred_check
          %p595 = pneg %p285
        $region66: #{tpu_custom_call.1} parent=43 // pred_check_branch
          %597 = sbr.rel (%p595) target = $region68
        $region67: #{tpu_custom_call.1} parent=43 // pred_region
          %s598 = sand.u32 %s39, 1
          %s599 = scalar_lea.sflag [#allocation18], %s598
          %s600 = sand.u32 %s275, 1
          %s601 = scalar_lea.vmem [#allocation19], %s600
          %s603 = ssub.s32 16, 16
          %604 = vsyncadd %s599, %s603
          %s605 = smul.addr %s47, 16
          %s606 = scalar_lea.hbm %s9, %s605
          %s608 = sshll.u32 %s601, 4
          %s609 = int_to_ptr.vmem [resolvable:$true] %s608
          %611 = dma.hbm_to_vmem [thread:$0]  %s606, 16, %s609, %s599
        $region68: #{tpu_custom_call.1} parent=43 // pred_fallthru
          _
        // Predicated region
        $region69: #{tpu_custom_call.1} parent=43 // pred_check
          %p612 = pneg %p311
        $region70: #{tpu_custom_call.1} parent=43 // pred_check_branch
          %614 = sbr.rel (%p612) target = $region72
        $region71: #{tpu_custom_call.1} parent=43 // pred_region
          %s615 = sand.u32 %s39, 1
          %s616 = scalar_lea.sflag [#allocation21], %s615
          %s617 = sand.u32 %s301, 1
          %s618 = smul.addr %s617, 2
          %s619 = scalar_lea.vmem [#allocation20], %s618
          %s621 = ssub.s32 32, 32
          %622 = vsyncadd %s616, %s621
          %s623 = smul.addr %s47, 32
          %s624 = scalar_lea.hbm %s10, %s623
          %s626 = sshll.u32 %s619, 4
          %s627 = int_to_ptr.vmem [resolvable:$true] %s626
          %629 = dma.hbm_to_vmem [thread:$0]  %s624, 32, %s627, %s616
        $region72: #{tpu_custom_call.1} parent=43 // pred_fallthru
          _
      $region44: #{tpu_custom_call.1} parent=5 // pred_fallthru
        _
      %p630 = scmp.le.s32.totalorder 1, %s39
      %p631 = scmp.lt.s32.totalorder %s39, 17
      %p632 = pnand %p630, %p631
      %p633 = pneg %p632
      // Predicated region
      $region73: #{tpu_custom_call.1} parent=5 // pred_check
        _
      $region74: #{tpu_custom_call.1} parent=5 // pred_check_branch
        %635 = sbr.rel (%p632) target = $region76
      $region75: #{tpu_custom_call.1} parent=5 // pred_region
        %s636 = ssub.s32 %s39, 1
        // Predicated region
        $region77: #{tpu_custom_call.1} parent=75 // pred_check
          %p637 = pneg %p72
        $region78: #{tpu_custom_call.1} parent=75 // pred_check_branch
          %639 = sbr.rel (%p637) target = $region80
        $region79: #{tpu_custom_call.1} parent=75 // pred_region
          %640 = dma.done [#allocation6], 16
        $region80: #{tpu_custom_call.1} parent=75 // pred_fallthru
          _
        // Predicated region
        $region81: #{tpu_custom_call.1} parent=75 // pred_check
          %p641 = pneg %p93
        $region82: #{tpu_custom_call.1} parent=75 // pred_check_branch
          %643 = sbr.rel (%p641) target = $region84
        $region83: #{tpu_custom_call.1} parent=75 // pred_region
          %644 = dma.done [#allocation4], 128
        $region84: #{tpu_custom_call.1} parent=75 // pred_fallthru
          _
        // Predicated region
        $region85: #{tpu_custom_call.1} parent=75 // pred_check
          %p645 = pneg %p114
        $region86: #{tpu_custom_call.1} parent=75 // pred_check_branch
          %647 = sbr.rel (%p645) target = $region88
        $region87: #{tpu_custom_call.1} parent=75 // pred_region
          %648 = dma.done [#allocation9], 128
        $region88: #{tpu_custom_call.1} parent=75 // pred_fallthru
          _
        // Predicated region
        $region89: #{tpu_custom_call.1} parent=75 // pred_check
          %p649 = pneg %p135
        $region90: #{tpu_custom_call.1} parent=75 // pred_check_branch
          %651 = sbr.rel (%p649) target = $region92
        $region91: #{tpu_custom_call.1} parent=75 // pred_region
          %652 = dma.done [#allocation9], 128
        $region92: #{tpu_custom_call.1} parent=75 // pred_fallthru
          _
        %s653 = sand.u32 %s44, 1
        %s654 = scalar_lea.sflag [#allocation12], %s653
        %s655 = sand.u32 %s148, 1
        %s656 = smul.addr %s655, 8
        %s657 = scalar_lea.vmem [#allocation11], %s656
        // Predicated region
        $region93: #{tpu_custom_call.1} parent=75 // pred_check
          %p658 = pneg %p161
        $region94: #{tpu_custom_call.1} parent=75 // pred_check_branch
          %660 = sbr.rel (%p658) target = $region96
        $region95: #{tpu_custom_call.1} parent=75 // pred_region
          %661 = dma.done %s654, 128
        $region96: #{tpu_custom_call.1} parent=75 // pred_fallthru
          _
        %s662 = sand.u32 %s44, 1
        %s663 = scalar_lea.sflag [#allocation12], %s662
        %s664 = sand.u32 %s174, 1
        %s665 = smul.addr %s664, 8
        %s666 = scalar_lea.vmem [#allocation13], %s665
        // Predicated region
        $region97: #{tpu_custom_call.1} parent=75 // pred_check
          %p667 = pneg %p187
        $region98: #{tpu_custom_call.1} parent=75 // pred_check_branch
          %669 = sbr.rel (%p667) target = $region100
        $region99: #{tpu_custom_call.1} parent=75 // pred_region
          %670 = dma.done %s663, 128
        $region100: #{tpu_custom_call.1} parent=75 // pred_fallthru
          _
        %s671 = sand.u32 %s44, 1
        %s672 = scalar_lea.sflag [#allocation15], %s671
        %s673 = sand.u32 %s200, 1
        %s674 = smul.addr %s673, 16
        %s675 = scalar_lea.vmem [#allocation14], %s674
        // Predicated region
        $region101: #{tpu_custom_call.1} parent=75 // pred_check
          %p676 = pneg %p213
        $region102: #{tpu_custom_call.1} parent=75 // pred_check_branch
          %678 = sbr.rel (%p676) target = $region104
        $region103: #{tpu_custom_call.1} parent=75 // pred_region
          %679 = dma.done %s672, 256
        $region104: #{tpu_custom_call.1} parent=75 // pred_fallthru
          _
        %s680 = sand.u32 %s44, 1
        %s681 = scalar_lea.sflag [#allocation15], %s680
        %s682 = sand.u32 %s226, 1
        %s683 = scalar_lea.vmem [#allocation16], %s682
        // Predicated region
        $region105: #{tpu_custom_call.1} parent=75 // pred_check
          %p684 = pneg %p239
        $region106: #{tpu_custom_call.1} parent=75 // pred_check_branch
          %686 = sbr.rel (%p684) target = $region108
        $region107: #{tpu_custom_call.1} parent=75 // pred_region
          %687 = dma.done %s681, 16
        $region108: #{tpu_custom_call.1} parent=75 // pred_fallthru
          _
        %s688 = sand.u32 %s44, 1
        %s689 = scalar_lea.sflag [#allocation18], %s688
        %s690 = sand.u32 %s252, 1
        %s691 = smul.addr %s690, 16
        %s692 = scalar_lea.vmem [#allocation17], %s691
        // Predicated region
        $region109: #{tpu_custom_call.1} parent=75 // pred_check
          %p693 = pneg %p265
        $region110: #{tpu_custom_call.1} parent=75 // pred_check_branch
          %695 = sbr.rel (%p693) target = $region112
        $region111: #{tpu_custom_call.1} parent=75 // pred_region
          %696 = dma.done %s689, 256
        $region112: #{tpu_custom_call.1} parent=75 // pred_fallthru
          _
        %s697 = sand.u32 %s44, 1
        %s698 = scalar_lea.sflag [#allocation18], %s697
        %s699 = sand.u32 %s278, 1
        %s700 = scalar_lea.vmem [#allocation19], %s699
        // Predicated region
        $region113: #{tpu_custom_call.1} parent=75 // pred_check
          %p701 = pneg %p291
        $region114: #{tpu_custom_call.1} parent=75 // pred_check_branch
          %703 = sbr.rel (%p701) target = $region116
        $region115: #{tpu_custom_call.1} parent=75 // pred_region
          %704 = dma.done %s698, 16
        $region116: #{tpu_custom_call.1} parent=75 // pred_fallthru
          _
        %s705 = sand.u32 %s44, 1
        %s706 = scalar_lea.sflag [#allocation21], %s705
        %s707 = sand.u32 %s304, 1
        %s708 = smul.addr %s707, 2
        %s709 = scalar_lea.vmem [#allocation20], %s708
        // Predicated region
        $region117: #{tpu_custom_call.1} parent=75 // pred_check
          %p710 = pneg %p317
        $region118: #{tpu_custom_call.1} parent=75 // pred_check_branch
          %712 = sbr.rel (%p710) target = $region120
        $region119: #{tpu_custom_call.1} parent=75 // pred_region
          %713 = dma.done %s706, 32
        $region120: #{tpu_custom_call.1} parent=75 // pred_fallthru
          _
        // Predicated region
        $region121: #{tpu_custom_call.1} parent=75 // pred_check
          %p714 = pneg %p338
        $region122: #{tpu_custom_call.1} parent=75 // pred_check_branch
          %716 = sbr.rel (%p714) target = $region124
        $region123: #{tpu_custom_call.1} parent=75 // pred_region
          %717 = dma.done [#allocation21], 16
        $region124: #{tpu_custom_call.1} parent=75 // pred_fallthru
          _
        // Predicated region
        $region125: #{tpu_custom_call.1} parent=75 // pred_check
          %p718 = pneg %p359
        $region126: #{tpu_custom_call.1} parent=75 // pred_check_branch
          %720 = sbr.rel (%p718) target = $region128
        $region127: #{tpu_custom_call.1} parent=75 // pred_region
          %721 = dma.done [#allocation24], 16
        $region128: #{tpu_custom_call.1} parent=75 // pred_fallthru
          _
        // Predicated region
        $region129: #{tpu_custom_call.1} parent=75 // pred_check
          %p722 = pneg %p380
        $region130: #{tpu_custom_call.1} parent=75 // pred_check_branch
          %724 = sbr.rel (%p722) target = $region132
        $region131: #{tpu_custom_call.1} parent=75 // pred_region
          %725 = dma.done [#allocation24], 16
        $region132: #{tpu_custom_call.1} parent=75 // pred_fallthru
          _
        %726 = sfence
        %p727 = pneg %p72
        %p728 = pneg %p69
        %p729 = pneg %p93
        %p730 = pneg %p90
        %p731 = pneg %p114
        %p732 = pneg %p111
        %p733 = pneg %p135
        %p734 = pneg %p132
        %s735 = sand.u32 %s44, 1
        %s736 = scalar_lea.sflag [#allocation12], %s735
        %s737 = sand.u32 %s148, 1
        %s738 = smul.addr %s737, 8
        %s739 = scalar_lea.vmem [#allocation11], %s738
        %p740 = pneg %p161
        %p741 = pneg %p158
        %s742 = sand.u32 %s44, 1
        %s743 = scalar_lea.sflag [#allocation12], %s742
        %s744 = sand.u32 %s174, 1
        %s745 = smul.addr %s744, 8
        %s746 = scalar_lea.vmem [#allocation13], %s745
        %p747 = pneg %p187
        %p748 = pneg %p184
        %s749 = sand.u32 %s44, 1
        %s750 = scalar_lea.sflag [#allocation15], %s749
        %s751 = sand.u32 %s200, 1
        %s752 = smul.addr %s751, 16
        %s753 = scalar_lea.vmem [#allocation14], %s752
        %p754 = pneg %p213
        %p755 = pneg %p210
        %s756 = sand.u32 %s44, 1
        %s757 = scalar_lea.sflag [#allocation15], %s756
        %s758 = sand.u32 %s226, 1
        %s759 = scalar_lea.vmem [#allocation16], %s758
        %p760 = pneg %p239
        %p761 = pneg %p236
        %s762 = sand.u32 %s44, 1
        %s763 = scalar_lea.sflag [#allocation18], %s762
        %s764 = sand.u32 %s252, 1
        %s765 = smul.addr %s764, 16
        %s766 = scalar_lea.vmem [#allocation17], %s765
        %p767 = pneg %p265
        %p768 = pneg %p262
        %s769 = sand.u32 %s44, 1
        %s770 = scalar_lea.sflag [#allocation18], %s769
        %s771 = sand.u32 %s278, 1
        %s772 = scalar_lea.vmem [#allocation19], %s771
        %p773 = pneg %p291
        %p774 = pneg %p288
        %s775 = sand.u32 %s44, 1
        %s776 = scalar_lea.sflag [#allocation21], %s775
        %s777 = sand.u32 %s304, 1
        %s778 = smul.addr %s777, 2
        %s779 = scalar_lea.vmem [#allocation20], %s778
        %p780 = pneg %p317
        %p781 = pneg %p314
        %p782 = pneg %p338
        %p783 = pneg %p335
        %p784 = pneg %p359
        %p785 = pneg %p356
        %p786 = pneg %p380
        %p787 = pneg %p377
        %p788 = pneg %p406
        %p789 = pneg %p403
        %s790 = sand.u32 %s393, 1
        %s791 = scalar_lea.sflag [#allocation5], %s790
        %s792 = sand.u32 %s393, 1
        %s793 = smul.addr %s792, 8
        %s794 = scalar_lea.vmem [#allocation26], %s793
        %p796 = scmp.eq.s32.totalorder %s49, 0
        // Predicated region
        $region133: #{tpu_custom_call.1} parent=75 // pred_check
          %p797 = pneg %p796
        $region134: #{tpu_custom_call.1} parent=75 // pred_check_branch
          %799 = sbr.rel (%p797) target = $region136
        $region135: #{tpu_custom_call.1} parent=75 // pred_region
          %vm800 = vcmask 261120
          %801 = vst.msk [vmem:[#allocation2] sm:$0xff] %vm800, 0.0
        $region136: #{tpu_custom_call.1} parent=75 // pred_fallthru
          _
        %v802 = vld [vmem:[%s657] sm:$0xff]
        %v803 = vpack.c.bf16 %v802, %v802
        %v804 = vld [vmem:[%s666] sm:$0xff]
        %v805 = vpack.c.bf16 %v804, %v804
        %v806 = vld [vmem:[%s675] sm:$0xf]
        %v807 = vld [vmem:[%s675 + $0x4] sm:$0xf]
        %v808 = vld [vmem:[%s675 + $0x8] sm:$0xf]
        %v809 = vld [vmem:[%s675 + $0xc] sm:$0xf]
        %v810 = vld [vmem:[%s683] sm:$0x1]
        %v812 = vlaneseq
        %v813 = vshrl.u32 %v812, 7
        %v814 = vsub.s32 0, %v813
        %v815 = vrot.slane %v810, %v814
        %v821 = vunpack.c.l.b16 %v806
        %v822 = vunpack.c.l.b16 %v807
        %v823 = vunpack.c.l.b16 %v808
        %v824 = vunpack.c.l.b16 %v809
        %v825 = vpack.c.b16 %v822, %v821
        %v826 = vpack.c.b16 %v824, %v823
        %vm829 = vcmask 261120
        %v831 = vsel %vm829, %v803, 0
        %833 = vmatprep.subr.bf16.mxu0 0
        %834 = vmatpush1.bf16.msra.mxu0 %v825
        %835 = vmatprep.subr.bf16.mxu0 0
        %836 = vmatpush1.bf16.msra.mxu0 %v826
        %837 = vmatprep.subr.bf16.mxu0 0
        %838 = vmatpush1.bf16.msra.mxu0 0
        %839 = vmatprep.subr.bf16.mxu0 0
        %840 = vmatpush1.bf16.msra.mxu0 0
        %841 = vmatprep.subr.bf16.mxu0 0
        %842 = vmatpush1.bf16.msra.mxu0 0
        %843 = vmatprep.subr.bf16.mxu0 0
        %844 = vmatpush1.bf16.msra.mxu0 0
        %845 = vmatprep.subr.bf16.mxu0 0
        %846 = vmatpush1.bf16.msra.mxu0 0
        %847 = vmatprep.subr.bf16.mxu0 0
        %848 = vmatpush1.bf16.msra.mxu0 0
        %849 = vmatprep.subr.bf16.mxu0 0
        %850 = vmatpush1.bf16.msra.mxu0 0
        %851 = vmatprep.subr.bf16.mxu0 0
        %852 = vmatpush1.bf16.msra.mxu0 0
        %853 = vmatprep.subr.bf16.mxu0 0
        %854 = vmatpush1.bf16.msra.mxu0 0
        %855 = vmatprep.subr.bf16.mxu0 0
        %856 = vmatpush1.bf16.msra.mxu0 0
        %857 = vmatprep.subr.bf16.mxu0 0
        %858 = vmatpush1.bf16.msra.mxu0 0
        %859 = vmatprep.subr.bf16.mxu0 0
        %860 = vmatpush1.bf16.msra.mxu0 0
        %861 = vmatprep.subr.bf16.mxu0 0
        %862 = vmatpush1.bf16.msra.mxu0 0
        %863 = vmatprep.subr.bf16.mxu0 0
        %864 = vmatpush1.bf16.msra.mxu0 0
        %865 = vmatprep.mubr.bf16.mxu0 0
        %866 = vmatmul.mubr.bf16.gmra.mrb[0].mxu0 %v831
        %v867 = vpop.f32.mrb[0].mxu0
        %v868 = vadd.f32 %v815, %v867
        %v869 = vpop.f32.mrb[0].mxu0
        %v870 = vpop.f32.mrb[0].mxu0
        %v871 = vpop.f32.mrb[0].mxu0
        %872 = vdwg.mxu0
        %v873 = vld [vmem:[%s692] sm:$0xf]
        %v874 = vld [vmem:[%s692 + $0x4] sm:$0xf]
        %v875 = vld [vmem:[%s692 + $0x8] sm:$0xf]
        %v876 = vld [vmem:[%s692 + $0xc] sm:$0xf]
        %v877 = vld [vmem:[%s700] sm:$0x1]
        %v879 = vlaneseq
        %v880 = vshrl.u32 %v879, 7
        %v881 = vsub.s32 0, %v880
        %v882 = vrot.slane %v877, %v881
        %v888 = vunpack.c.l.b16 %v873
        %v889 = vunpack.c.l.b16 %v874
        %v890 = vunpack.c.l.b16 %v875
        %v891 = vunpack.c.l.b16 %v876
        %v892 = vpack.c.b16 %v889, %v888
        %v893 = vpack.c.b16 %v891, %v890
        %v897 = vsel %vm829, %v805, 0
        %899 = vmatprep.subr.bf16.mxu0 0
        %900 = vmatpush1.bf16.msra.mxu0 %v892
        %901 = vmatprep.subr.bf16.mxu0 0
        %902 = vmatpush1.bf16.msra.mxu0 %v893
        %903 = vmatprep.subr.bf16.mxu0 0
        %904 = vmatpush1.bf16.msra.mxu0 0
        %905 = vmatprep.subr.bf16.mxu0 0
        %906 = vmatpush1.bf16.msra.mxu0 0
        %907 = vmatprep.subr.bf16.mxu0 0
        %908 = vmatpush1.bf16.msra.mxu0 0
        %909 = vmatprep.subr.bf16.mxu0 0
        %910 = vmatpush1.bf16.msra.mxu0 0
        %911 = vmatprep.subr.bf16.mxu0 0
        %912 = vmatpush1.bf16.msra.mxu0 0
        %913 = vmatprep.subr.bf16.mxu0 0
        %914 = vmatpush1.bf16.msra.mxu0 0
        %915 = vmatprep.subr.bf16.mxu0 0
        %916 = vmatpush1.bf16.msra.mxu0 0
        %917 = vmatprep.subr.bf16.mxu0 0
        %918 = vmatpush1.bf16.msra.mxu0 0
        %919 = vmatprep.subr.bf16.mxu0 0
        %920 = vmatpush1.bf16.msra.mxu0 0
        %921 = vmatprep.subr.bf16.mxu0 0
        %922 = vmatpush1.bf16.msra.mxu0 0
        %923 = vmatprep.subr.bf16.mxu0 0
        %924 = vmatpush1.bf16.msra.mxu0 0
        %925 = vmatprep.subr.bf16.mxu0 0
        %926 = vmatpush1.bf16.msra.mxu0 0
        %927 = vmatprep.subr.bf16.mxu0 0
        %928 = vmatpush1.bf16.msra.mxu0 0
        %929 = vmatprep.subr.bf16.mxu0 0
        %930 = vmatpush1.bf16.msra.mxu0 0
        %931 = vmatprep.mubr.bf16.mxu0 0
        %932 = vmatmul.mubr.bf16.gmra.mrb[0].mxu0 %v897
        %v933 = vpop.f32.mrb[0].mxu0
        %v934 = vadd.f32 %v882, %v933
        %v935 = vpop.f32.mrb[0].mxu0
        %v936 = vpop.f32.mrb[0].mxu0
        %v937 = vpop.f32.mrb[0].mxu0
        %938 = vdwg.mxu0
        %v939 = vpack.c.bf16 %v868, %v868
        %vm940 = vcmask 31744
        %v942 = vsel %vm940, %v939, 0
        %944 = vmatprep.subr.bf16.mxu0 0
        %945 = vmatpush1.bf16.xpose.msra.mxu0 %v942
        %946 = vmatprep.subr.bf16.mxu0 0
        %947 = vmatpush1.bf16.xpose.msra.mxu0 0
        %948 = vmatprep.subr.bf16.mxu0 0
        %949 = vmatpush1.bf16.xpose.msra.mxu0 0
        %950 = vmatprep.subr.bf16.mxu0 0
        %951 = vmatpush1.bf16.xpose.msra.mxu0 0
        %952 = vmatprep.subr.bf16.mxu0 0
        %953 = vmatpush1.bf16.xpose.msra.mxu0 0
        %954 = vmatprep.subr.bf16.mxu0 0
        %955 = vmatpush1.bf16.xpose.msra.mxu0 0
        %956 = vmatprep.subr.bf16.mxu0 0
        %957 = vmatpush1.bf16.xpose.msra.mxu0 0
        %958 = vmatprep.subr.bf16.mxu0 0
        %959 = vmatpush1.bf16.xpose.msra.mxu0 0
        %960 = vmatprep.subr.bf16.mxu0 0
        %961 = vmatpush1.bf16.xpose.msra.mxu0 0
        %962 = vmatprep.subr.bf16.mxu0 0
        %963 = vmatpush1.bf16.xpose.msra.mxu0 0
        %964 = vmatprep.subr.bf16.mxu0 0
        %965 = vmatpush1.bf16.xpose.msra.mxu0 0
        %966 = vmatprep.subr.bf16.mxu0 0
        %967 = vmatpush1.bf16.xpose.msra.mxu0 0
        %968 = vmatprep.subr.bf16.mxu0 0
        %969 = vmatpush1.bf16.xpose.msra.mxu0 0
        %970 = vmatprep.subr.bf16.mxu0 0
        %971 = vmatpush1.bf16.xpose.msra.mxu0 0
        %972 = vmatprep.subr.bf16.mxu0 0
        %973 = vmatpush1.bf16.xpose.msra.mxu0 0
        %974 = vmatprep.subr.bf16.mxu0 0
        %975 = vmatpush1.bf16.xpose.msra.mxu0 0
        %976 = vmatprep.mubr.bf16.mxu0 0
        %977 = vmatmul.mubr.bf16.gmra.mrb[0].mxu0 %v942
        %v978 = vpop.f32.mrb[0].mxu0
        %v979 = vadd.f32 0.0, %v978
        %v980 = vpop.f32.mrb[0].mxu0
        %v981 = vpop.f32.mrb[0].mxu0
        %v982 = vpop.f32.mrb[0].mxu0
        %983 = vdwg.mxu0
        %v984 = vmul.f32 %v979, 0.5
        %v985 = vld [vmem:[#allocation7] sm:$0xff]
        %v986 = vadd.f32 %v984, %v985
        %vm987 = vcmask 64512
        %v988 = vsel %vm987, %v986, -inf
        %989 = vmax.xlane.f32.xlu0 %v988
        %v990 = vpop.xlane.xlu0 %989
        %v991 = vsub.f32 %v986, %v990
        %v992 = vmul.f32 %v991, 1.442695
        %v993 = vpow.pop %v992
        %v994 = vsel %vm987, %v993, 0.0
        %995 = vadd.xlane.f32.xlu0 %v994
        %v996 = vpop.xlane.xlu0 %995
        %v997 = vrcp.pop %v996
        %v998 = vmul.f32 %v993, %v997
        %1000 = vrot.lane.b32.xlu0 %v998, 127
        %v1001 = vpop.permute.xlu0 %1000
        %vm1003 = vcmask 56320
        %v1004 = vsel %vm1003, %v1001, 0.0
        %v1005 = vadd.f32 %v998, %v1004
        %1007 = vrot.lane.b32.xlu0 %v1005, 126
        %v1008 = vpop.permute.xlu0 %1007
        %vm1010 = vcmask 48128
        %v1011 = vsel %vm1010, %v1008, 0.0
        %v1012 = vadd.f32 %v1005, %v1011
        %1014 = vrot.lane.b32.xlu0 %v1012, 124
        %v1015 = vpop.permute.xlu0 %1014
        %v1017 = vsel %vm940, %v1015, 0.0
        %v1018 = vadd.f32 %v1012, %v1017
        %v1019 = vsub.f32 %v1018, %v998
        %v1020 = vld [vmem:[#allocation10] sm:$0xff]
        %v1021 = vmul.f32 %v1019, %v1020
        %v1022 = vmax.f32 %v1021, 0.0
        %v1023 = vrsqrt.pop %v1022
        %v1024 = vmul.f32 %v1022, %v1023
        %vm1025 = vcmp.eq.f32.partialorder %v1022, inf
        %v1026 = vsel %vm1025, %v1022, %v1024
        %vm1027 = vcmp.eq.f32.partialorder %v1022, 0.0
        %v1028 = vand.u32 %v1022, 2147483648
        %v1029 = vsel %vm1027, %v1028, %v1026
        %s1030 = sld [smem:[#allocation3 + %s49]]
        %v1031 = vstv %s1030
        %v1032 = vmul.f32 %v1029, %v1031
        %v1033 = vmul.f32 %v1032, 1.442695
        %v1034 = vpow.pop %v1033
        %v1035 = vmax.f32 %v1034, 1e-05
        %v1036 = vmul.f32 %v984, %v1035
        %v1037 = vadd.f32 %v1036, %v985
        %v1038 = vsel %vm987, %v1037, -inf
        %1039 = vmax.xlane.f32.xlu0 %v1038
        %v1040 = vpop.xlane.xlu0 %1039
        %v1041 = vsub.f32 %v1037, %v1040
        %v1042 = vmul.f32 %v1041, 1.442695
        %v1043 = vpow.pop %v1042
        %v1044 = vsel %vm987, %v1043, 0.0
        %1045 = vadd.xlane.f32.xlu0 %v1044
        %v1046 = vpop.xlane.xlu0 %1045
        %v1047 = vrcp.pop %v1046
        %v1048 = vmul.f32 %v1043, %v1047
        %v1049 = vld [vmem:[#allocation8] sm:$0xff]
        %v1050 = vmul.f32 %v1048, %v1049
        %v1051 = vpack.c.bf16 %v1050, %v1050
        %v1052 = vpack.c.bf16 %v934, %v934
        %v1054 = vsel %vm987, %v1051, 0
        %vm1056 = vcmask 1043456
        %v1058 = vsel %vm1056, %v1052, 0
        %1060 = vmatprep.subr.bf16.mxu0 0
        %1061 = vmatpush1.bf16.msra.mxu0 %v1058
        %1062 = vmatprep.subr.bf16.mxu0 0
        %1063 = vmatpush1.bf16.msra.mxu0 0
        %1064 = vmatprep.subr.bf16.mxu0 0
        %1065 = vmatpush1.bf16.msra.mxu0 0
        %1066 = vmatprep.subr.bf16.mxu0 0
        %1067 = vmatpush1.bf16.msra.mxu0 0
        %1068 = vmatprep.subr.bf16.mxu0 0
        %1069 = vmatpush1.bf16.msra.mxu0 0
        %1070 = vmatprep.subr.bf16.mxu0 0
        %1071 = vmatpush1.bf16.msra.mxu0 0
        %1072 = vmatprep.subr.bf16.mxu0 0
        %1073 = vmatpush1.bf16.msra.mxu0 0
        %1074 = vmatprep.subr.bf16.mxu0 0
        %1075 = vmatpush1.bf16.msra.mxu0 0
        %1076 = vmatprep.subr.bf16.mxu0 0
        %1077 = vmatpush1.bf16.msra.mxu0 0
        %1078 = vmatprep.subr.bf16.mxu0 0
        %1079 = vmatpush1.bf16.msra.mxu0 0
        %1080 = vmatprep.subr.bf16.mxu0 0
        %1081 = vmatpush1.bf16.msra.mxu0 0
        %1082 = vmatprep.subr.bf16.mxu0 0
        %1083 = vmatpush1.bf16.msra.mxu0 0
        %1084 = vmatprep.subr.bf16.mxu0 0
        %1085 = vmatpush1.bf16.msra.mxu0 0
        %1086 = vmatprep.subr.bf16.mxu0 0
        %1087 = vmatpush1.bf16.msra.mxu0 0
        %1088 = vmatprep.subr.bf16.mxu0 0
        %1089 = vmatpush1.bf16.msra.mxu0 0
        %1090 = vmatprep.subr.bf16.mxu0 0
        %1091 = vmatpush1.bf16.msra.mxu0 0
        %1092 = vmatprep.mubr.bf16.mxu0 0
        %1093 = vmatmul.mubr.bf16.gmra.mrb[0].mxu0 %v1054
        %v1094 = vpop.f32.mrb[0].mxu0
        %v1095 = vadd.f32 0.0, %v1094
        %v1096 = vpop.f32.mrb[0].mxu0
        %v1097 = vpop.f32.mrb[0].mxu0
        %v1098 = vpop.f32.mrb[0].mxu0
        %1099 = vdwg.mxu0
        %v1100 = vld [vmem:[#allocation2] sm:$0xff]
        %v1101 = vpack.c.bf16 %v1095, %v1095
        %v1102 = vld [vmem:[%s709] sm:$0x3]
        %v1104 = vsel %vm940, %v1101, 0
        %vm1106 = vcmask 1041408
        %v1108 = vsel %vm1106, %v1102, 0
        %1110 = vmatprep.subr.bf16.mxu0 0
        %1111 = vmatpush1.bf16.msra.mxu0 %v1108
        %1112 = vmatprep.subr.bf16.mxu0 0
        %1113 = vmatpush1.bf16.msra.mxu0 0
        %1114 = vmatprep.subr.bf16.mxu0 0
        %1115 = vmatpush1.bf16.msra.mxu0 0
        %1116 = vmatprep.subr.bf16.mxu0 0
        %1117 = vmatpush1.bf16.msra.mxu0 0
        %1118 = vmatprep.subr.bf16.mxu0 0
        %1119 = vmatpush1.bf16.msra.mxu0 0
        %1120 = vmatprep.subr.bf16.mxu0 0
        %1121 = vmatpush1.bf16.msra.mxu0 0
        %1122 = vmatprep.subr.bf16.mxu0 0
        %1123 = vmatpush1.bf16.msra.mxu0 0
        %1124 = vmatprep.subr.bf16.mxu0 0
        %1125 = vmatpush1.bf16.msra.mxu0 0
        %1126 = vmatprep.subr.bf16.mxu0 0
        %1127 = vmatpush1.bf16.msra.mxu0 0
        %1128 = vmatprep.subr.bf16.mxu0 0
        %1129 = vmatpush1.bf16.msra.mxu0 0
        %1130 = vmatprep.subr.bf16.mxu0 0
        %1131 = vmatpush1.bf16.msra.mxu0 0
        %1132 = vmatprep.subr.bf16.mxu0 0
        %1133 = vmatpush1.bf16.msra.mxu0 0
        %1134 = vmatprep.subr.bf16.mxu0 0
        %1135 = vmatpush1.bf16.msra.mxu0 0
        %1136 = vmatprep.subr.bf16.mxu0 0
        %1137 = vmatpush1.bf16.msra.mxu0 0
        %1138 = vmatprep.subr.bf16.mxu0 0
        %1139 = vmatpush1.bf16.msra.mxu0 0
        %1140 = vmatprep.subr.bf16.mxu0 0
        %1141 = vmatpush1.bf16.msra.mxu0 0
        %1142 = vmatprep.mubr.bf16.mxu0 0
        %1143 = vmatmul.mubr.bf16.gmra.mrb[0].mxu0 %v1104
        %v1144 = vpop.f32.mrb[0].mxu0
        %v1145 = vadd.f32 0.0, %v1144
        %v1146 = vpop.f32.mrb[0].mxu0
        %v1147 = vpop.f32.mrb[0].mxu0
        %v1148 = vpop.f32.mrb[0].mxu0
        %1149 = vdwg.mxu0
        %v1150 = vadd.f32 %v1100, %v1145
        %1151 = vst.msk [vmem:[#allocation2] sm:$0xff] %vm829, %v1150
        %p1152 = scmp.eq.s32.totalorder %s49, 7
        // Predicated region
        $region137: #{tpu_custom_call.1} parent=75 // pred_check
          %p1153 = pneg %p1152
        $region138: #{tpu_custom_call.1} parent=75 // pred_check_branch
          %1155 = sbr.rel (%p1153) target = $region140
        $region139: #{tpu_custom_call.1} parent=75 // pred_region
          %v1156 = vld [vmem:[#allocation2] sm:$0xff]
          %v1157 = vld [vmem:[#allocation22] sm:$0x1]
          %v1159 = vlaneseq
          %v1160 = vshrl.u32 %v1159, 7
          %v1161 = vsub.s32 0, %v1160
          %v1162 = vrot.slane %v1157, %v1161
          %v1164 = vadd.f32 %v1156, %v1162
          %v1165 = vadd.f32 %v802, %v1164
          %v1166 = vsel %vm829, %v1165, 0.0
          %1167 = vadd.xlane.f32.xlu0 %v1166
          %v1168 = vpop.xlane.xlu0 %1167
          %v1169 = vrcp.pop 32.0
          %v1170 = vmul.f32 %v1168, %v1169
          %v1171 = vsub.f32 %v1165, %v1170
          %v1172 = vmul.f32 %v1171, %v1171
          %v1173 = vsel %vm829, %v1172, 0.0
          %1174 = vadd.xlane.f32.xlu0 %v1173
          %v1175 = vpop.xlane.xlu0 %1174
          %v1176 = vmul.f32 %v1175, %v1169
          %v1177 = vadd.f32 %v1176, 1e-05
          %v1178 = vrsqrt.pop %v1177
          %v1179 = vmul.f32 %v1171, %v1178
          %v1180 = vld [vmem:[#allocation23] sm:$0x1]
          %v1182 = vlaneseq
          %v1183 = vshrl.u32 %v1182, 7
          %v1184 = vsub.s32 0, %v1183
          %v1185 = vrot.slane %v1180, %v1184
          %v1187 = vmul.f32 %v1179, %v1185
          %v1188 = vld [vmem:[#allocation25] sm:$0x1]
          %v1190 = vlaneseq
          %v1191 = vshrl.u32 %v1190, 7
          %v1192 = vsub.s32 0, %v1191
          %v1193 = vrot.slane %v1188, %v1192
          %v1195 = vadd.f32 %v1187, %v1193
          %1196 = vst.msk [vmem:[%s794] sm:$0xff] %vm829, %v1195
        $region140: #{tpu_custom_call.1} parent=75 // pred_fallthru
          _
        %s1197 = sand.u32 %s393, 1
        %s1198 = scalar_lea.sflag [#allocation5], %s1197
        %s1199 = sand.u32 %s393, 1
        %s1200 = smul.addr %s1199, 8
        %s1201 = scalar_lea.vmem [#allocation26], %s1200
        // Predicated region
        $region141: #{tpu_custom_call.1} parent=75 // pred_check
          %p1202 = pneg %p403
        $region142: #{tpu_custom_call.1} parent=75 // pred_check_branch
          %1204 = sbr.rel (%p1202) target = $region144
        $region143: #{tpu_custom_call.1} parent=75 // pred_region
          %s1206 = ssub.s32 128, 128
          %1207 = vsyncadd %s1198, %s1206
          %s1208 = smul.addr %s48, 128
          %s1209 = scalar_lea.hbm %s14, %s1208
          %s1211 = sshll.u32 %s1201, 4
          %s1212 = int_to_ptr.vmem [resolvable:$true] %s1211
          %1214 = dma.vmem_to_hbm [thread:$0]  %s1212, 128, %s1209, %s1198
        $region144: #{tpu_custom_call.1} parent=75 // pred_fallthru
          _
      $region76: #{tpu_custom_call.1} parent=5 // pred_fallthru
        _
      %p1215 = scmp.le.s32.totalorder 2, %s39
      // Predicated region
      $region145: #{tpu_custom_call.1} parent=5 // pred_check
        %p1216 = pneg %p1215
      $region146: #{tpu_custom_call.1} parent=5 // pred_check_branch
        %1218 = sbr.rel (%p1216) target = $region148
      $region147: #{tpu_custom_call.1} parent=5 // pred_region
        %s1219 = ssub.s32 %s39, 2
        // Predicated region
        $region149: #{tpu_custom_call.1} parent=147 // pred_check
          %p1220 = pneg %p409
        $region150: #{tpu_custom_call.1} parent=147 // pred_check_branch
          %1222 = sbr.rel (%p1220) target = $region152
        $region151: #{tpu_custom_call.1} parent=147 // pred_region
          %s1223 = sand.u32 %s394, 1
          %s1224 = scalar_lea.sflag [#allocation5], %s1223
          %s1225 = sand.u32 %s394, 1
          %s1226 = smul.addr %s1225, 8
          %s1227 = scalar_lea.vmem [#allocation26], %s1226
          %1228 = dma.done %s1224, 128
        $region152: #{tpu_custom_call.1} parent=147 // pred_fallthru
          _
      $region148: #{tpu_custom_call.1} parent=5 // pred_fallthru
        _
    $region6: #{tpu_custom_call.1} parent=1 // loop_footer
      %s43 = sadd.s32 1, %s39
    $region7: #{tpu_custom_call.1} parent=1 // loop_footer_branch
      %38 = sbr.rel target = $region3
    $region8: #{tpu_custom_call.1} parent=1 // loop_exit
      _
    %1229 = vsyncpa [#allocation4], 1
    %s1230 = scalar_lea.sflag [#allocation4], 1
    %1231 = vsyncpa %s1230, 1
    %1232 = vsyncpa [#allocation9], 1
    %1233 = vsyncpa [#allocation12], 1
    %s1234 = scalar_lea.sflag [#allocation12], 1
    %1235 = vsyncpa %s1234, 1
    %1236 = vsyncpa [#allocation15], 1
    %s1237 = scalar_lea.sflag [#allocation15], 1
    %1238 = vsyncpa %s1237, 1
    %1239 = vsyncpa [#allocation18], 1
    %s1240 = scalar_lea.sflag [#allocation18], 1
    %1241 = vsyncpa %s1240, 1
    %1242 = vsyncpa [#allocation21], 1
    %s1243 = scalar_lea.sflag [#allocation21], 1
    %1244 = vsyncpa %s1243, 1
    %1245 = vsyncpa [#allocation24], 1
    %1246 = vsyncpa [#allocation5], 1
    %s1247 = scalar_lea.sflag [#allocation5], 1
    %1248 = vsyncpa %s1247, 1
    %1249 = vsyncpa [#allocation6], 1
    %s1250 = scalar_lea.sflag [#allocation6], 1
    %1251 = vsyncpa %s1250, 1

</llo_original>
